<compile_context>
chip_gen: v5e
topology: v5e:2x2
jax: 0.10.0
libtpu: 0.0.40
codegen_flags: <defaults>
</compile_context>

<pallas_src>
import math
import jax
import jax.numpy as jnp
from jax.experimental import pallas as pl
from jax.experimental.pallas import tpu as pltpu

D_MODEL = 32
N_HEADS = 4
D_K = D_MODEL // N_HEADS
D_FF = 64
N_LAYERS = 2
EPS = 1e-6


# ---------------------------------------------------------------------------
# in-kernel helpers
# ---------------------------------------------------------------------------
def _layernorm(x, a, b):
    """PyTorch-source LayerNorm: std uses n-1 (Bessel), eps added to std."""
    d = x.shape[-1]
    mean = jnp.mean(x, axis=-1, keepdims=True)
    var = jnp.sum((x - mean) ** 2, axis=-1, keepdims=True) / (d - 1)
    inv = pl.reciprocal(jnp.sqrt(var) + EPS, approx=True)
    return a * (x - mean) * inv + b


# ---------------------------------------------------------------------------
# fused Pallas kernel: N_LAYERS pre-LN encoder blocks + final LayerNorm
# ---------------------------------------------------------------------------
def encoder_kernel(x_ref, bias_ref,
                   ln_a_ref, ln_b_ref,
                   wqkv_ref, bqkv_ref, wo_ref, bo_ref,
                   w1_ref, b1_ref, w2_ref, b2_ref,
                   out_ref):
    x = x_ref[0]            # (S, D) f32 for this batch element
    bias = bias_ref[0]      # (1, S) additive key-mask bias (0 or -1e9)
    S, D = x.shape
    scale = 1.0 / math.sqrt(D_K)

    for li in range(N_LAYERS):                      # static, unrolled
        # --- sublayer 1: pre-LN multi-head self-attention + residual --------
        xn = _layernorm(x, ln_a_ref[2 * li], ln_b_ref[2 * li])
        qkv = jnp.dot(xn, wqkv_ref[li],
                      preferred_element_type=jnp.float32) + bqkv_ref[li]   # (S, 3D)
        q = qkv[:, :D] * scale
        k = qkv[:, D:2 * D]
        v = qkv[:, 2 * D:]

        # batch the heads: (N_HEADS, S, D_K)
        qh = jnp.stack([q[:, h * D_K:(h + 1) * D_K] for h in range(N_HEADS)], axis=0)
        kh = jnp.stack([k[:, h * D_K:(h + 1) * D_K] for h in range(N_HEADS)], axis=0)
        vh = jnp.stack([v[:, h * D_K:(h + 1) * D_K] for h in range(N_HEADS)], axis=0)

        scores = jnp.einsum('hqd,hkd->hqk', qh, kh,
                            preferred_element_type=jnp.float32) + bias     # (H,S,S)
        scores = scores - jnp.max(scores, axis=-1, keepdims=True)
        e = jnp.exp(scores)
        p = e * pl.reciprocal(jnp.sum(e, axis=-1, keepdims=True), approx=True)
        ctx = jnp.einsum('hqk,hkd->hqd', p, vh,
                         preferred_element_type=jnp.float32)               # (H,S,dk)
        attn = jnp.concatenate([ctx[h] for h in range(N_HEADS)], axis=-1)  # (S, D)
        attn = jnp.dot(attn, wo_ref[li],
                       preferred_element_type=jnp.float32) + bo_ref[li]
        # TODO(synk): dropout in SublayerConnection / attention is identity (eval mode).
        x = x + attn

        # --- sublayer 2: pre-LN position-wise feed-forward + residual -------
        xn2 = _layernorm(x, ln_a_ref[2 * li + 1], ln_b_ref[2 * li + 1])
        h1 = jnp.maximum(
            jnp.dot(xn2, w1_ref[li], preferred_element_type=jnp.float32) + b1_ref[li],
            0.0)
        ff = jnp.dot(h1, w2_ref[li], preferred_element_type=jnp.float32) + b2_ref[li]
        x = x + ff

    # --- Encoder's final LayerNorm ------------------------------------------
    x = _layernorm(x, ln_a_ref[2 * N_LAYERS], ln_b_ref[2 * N_LAYERS])
    out_ref[0] = x.astype(out_ref.dtype)


# ---------------------------------------------------------------------------
# wrapper (single pallas_call for the whole encoder)
# ---------------------------------------------------------------------------
def encoder_forward(x, mask, packed):
    """x: [n_b, S, D] f32; mask: [n_b, S] (1 = attend, 0 = masked key)."""
    n_b, S, D = x.shape
    # additive key-mask bias: 0 where attend, -1e9 where masked
    bias = (mask.astype(jnp.float32) - 1.0).reshape(n_b, 1, S) * 1e9

    args = (x, bias,
            packed["ln_a"], packed["ln_b"],
            packed["wqkv"], packed["bqkv"], packed["wo"], packed["bo"],
            packed["w1"], packed["b1"], packed["w2"], packed["b2"])

    def full_spec(a):
        nd = a.ndim
        return pl.BlockSpec(a.shape, lambda b, _nd=nd: (0,) * _nd)

    in_specs = [pl.BlockSpec((1, S, D), lambda b: (b, 0, 0)),
                pl.BlockSpec((1, 1, S), lambda b: (b, 0, 0))]
    in_specs += [full_spec(a) for a in args[2:]]

    return pl.pallas_call(
        encoder_kernel,
        out_shape=jax.ShapeDtypeStruct((n_b, S, D), jnp.float32),
        grid_spec=pltpu.PrefetchScalarGridSpec(
            num_scalar_prefetch=0,
            grid=(n_b,),
            in_specs=in_specs,
            out_specs=pl.BlockSpec((1, S, D), lambda b: (b, 0, 0))),
        compiler_params=pltpu.CompilerParams(dimension_semantics=("parallel",)),
    )(*args)


# ---------------------------------------------------------------------------
# deterministic parameter init (nn.Module-like) + packing for the kernel
# ---------------------------------------------------------------------------
def init_params(key):
    layers = []
    for _ in range(N_LAYERS):
        key, *ks = jax.random.split(key, 13)
        layers.append(dict(
            ln1_a=jnp.ones((1, D_MODEL), jnp.float32),
            ln1_b=jnp.zeros((1, D_MODEL), jnp.float32),
            wq=0.1 * jax.random.normal(ks[0], (D_MODEL, D_MODEL), jnp.float32),
            bq=0.1 * jax.random.normal(ks[1], (1, D_MODEL), jnp.float32),
            wk=0.1 * jax.random.normal(ks[2], (D_MODEL, D_MODEL), jnp.float32),
            bk=0.1 * jax.random.normal(ks[3], (1, D_MODEL), jnp.float32),
            wv=0.1 * jax.random.normal(ks[4], (D_MODEL, D_MODEL), jnp.float32),
            bv=0.1 * jax.random.normal(ks[5], (1, D_MODEL), jnp.float32),
            wo=0.1 * jax.random.normal(ks[6], (D_MODEL, D_MODEL), jnp.float32),
            bo=0.1 * jax.random.normal(ks[7], (1, D_MODEL), jnp.float32),
            ln2_a=jnp.ones((1, D_MODEL), jnp.float32),
            ln2_b=jnp.zeros((1, D_MODEL), jnp.float32),
            w1=0.1 * jax.random.normal(ks[8], (D_MODEL, D_FF), jnp.float32),
            b1=0.1 * jax.random.normal(ks[9], (1, D_FF), jnp.float32),
            w2=0.1 * jax.random.normal(ks[10], (D_FF, D_MODEL), jnp.float32),
            b2=0.1 * jax.random.normal(ks[11], (1, D_MODEL), jnp.float32),
        ))
    norm_a = jnp.ones((1, D_MODEL), jnp.float32)
    norm_b = jnp.zeros((1, D_MODEL), jnp.float32)
    return layers, norm_a, norm_b


def pack_params(layers, norm_a, norm_b):
    """Stack per-layer params along a leading axis; fuse QKV; append final norm."""
    ln_a_list, ln_b_list = [], []
    for p in layers:
        ln_a_list += [p["ln1_a"], p["ln2_a"]]
        ln_b_list += [p["ln1_b"], p["ln2_b"]]
    ln_a_list.append(norm_a)
    ln_b_list.append(norm_b)
    return dict(
        ln_a=jnp.stack(ln_a_list, axis=0),                         # (2N+1, 1, D)
        ln_b=jnp.stack(ln_b_list, axis=0),                         # (2N+1, 1, D)
        wqkv=jnp.stack([jnp.concatenate([p["wq"], p["wk"], p["wv"]], axis=1)
                        for p in layers], axis=0),                 # (N, D, 3D)
        bqkv=jnp.stack([jnp.concatenate([p["bq"], p["bk"], p["bv"]], axis=1)
                        for p in layers], axis=0),                 # (N, 1, 3D)
        wo=jnp.stack([p["wo"] for p in layers], axis=0),           # (N, D, D)
        bo=jnp.stack([p["bo"] for p in layers], axis=0),           # (N, 1, D)
        w1=jnp.stack([p["w1"] for p in layers], axis=0),           # (N, D, D_FF)
        b1=jnp.stack([p["b1"] for p in layers], axis=0),           # (N, 1, D_FF)
        w2=jnp.stack([p["w2"] for p in layers], axis=0),           # (N, D_FF, D)
        b2=jnp.stack([p["b2"] for p in layers], axis=0),           # (N, 1, D)
    )


# ---------------------------------------------------------------------------
# pure-JAX reference mirroring the PyTorch semantics (uses unpacked params)
# ---------------------------------------------------------------------------
def _ref_layernorm(x, a, b):
    d = x.shape[-1]
    mean = x.mean(-1, keepdims=True)
    var = ((x - mean) ** 2).sum(-1, keepdims=True) / (d - 1)
    return a * (x - mean) / (jnp.sqrt(var) + EPS) + b


def ref_encoder(x, mask, layers, norm_a, norm_b):
    n_b, S, D = x.shape
    m = mask.astype(jnp.float32)[:, None, None, :]  # (n_b,1,1,S)
    for p in layers:
        xn = _ref_layernorm(x, p["ln1_a"][0], p["ln1_b"][0])
        q = xn @ p["wq"] + p["bq"][0]
        k = xn @ p["wk"] + p["bk"][0]
        v = xn @ p["wv"] + p["bv"][0]
        sp = lambda t: t.reshape(n_b, S, N_HEADS, D_K).transpose(0, 2, 1, 3)
        qh, kh, vh = sp(q), sp(k), sp(v)
        scores = jnp.einsum("bhqd,bhkd->bhqk", qh, kh) / math.sqrt(D_K)
        scores = jnp.where(m == 0, -1e9, scores)
        pa = jax.nn.softmax(scores, axis=-1)
        ctx = jnp.einsum("bhqk,bhkd->bhqd", pa, vh).transpose(0, 2, 1, 3).reshape(n_b, S, D)
        x = x + (ctx @ p["wo"] + p["bo"][0])
        xn2 = _ref_layernorm(x, p["ln2_a"][0], p["ln2_b"][0])
        x = x + (jnp.maximum(xn2 @ p["w1"] + p["b1"][0], 0.0) @ p["w2"] + p["b2"][0])
    return _ref_layernorm(x, norm_a[0], norm_b[0])


# ---------------------------------------------------------------------------
if __name__ == "__main__":
    key = jax.random.PRNGKey(0)
    kx, kp = jax.random.split(key)

    n_b, S = 2, 8
    x = jax.random.normal(kx, (n_b, S, D_MODEL), jnp.float32)
    mask = jnp.array([[1, 1, 1, 1, 1, 1, 0, 0],
                      [1, 1, 1, 1, 0, 0, 0, 0]], dtype=jnp.float32)  # [n_b, S]

    layers, norm_a, norm_b = init_params(kp)
    packed = pack_params(layers, norm_a, norm_b)

    out = encoder_forward(x, mask, packed)
    out = jax.block_until_ready(out)

    ref = ref_encoder(x, mask, layers, norm_a, norm_b)
    assert out.shape == (n_b, S, D_MODEL)
    assert jnp.allclose(out, ref, rtol=5e-3, atol=5e-3), (
        float(jnp.max(jnp.abs(out - ref))))

    print("KERNEL_OK")
</pallas_src>

<mosaic_0001>
module attributes {stable_mosaic.version = 11 : i64} {
  func.func @encoder_kernel(%arg0: i32, %arg1: memref<1x8x32xf32, #tpu.memory_space<vmem>>, %arg2: memref<1x1x8xf32, #tpu.memory_space<vmem>>, %arg3: memref<5x1x32xf32, #tpu.memory_space<vmem>>, %arg4: memref<5x1x32xf32, #tpu.memory_space<vmem>>, %arg5: memref<2x32x96xf32, #tpu.memory_space<vmem>>, %arg6: memref<2x1x96xf32, #tpu.memory_space<vmem>>, %arg7: memref<2x32x32xf32, #tpu.memory_space<vmem>>, %arg8: memref<2x1x32xf32, #tpu.memory_space<vmem>>, %arg9: memref<2x32x64xf32, #tpu.memory_space<vmem>>, %arg10: memref<2x1x64xf32, #tpu.memory_space<vmem>>, %arg11: memref<2x64x32xf32, #tpu.memory_space<vmem>>, %arg12: memref<2x1x32xf32, #tpu.memory_space<vmem>>, %arg13: memref<1x8x32xf32, #tpu.memory_space<vmem>>) attributes {dimension_semantics = [#tpu.dimension_semantics<parallel>], iteration_bounds = array<i64: 2>, scalar_prefetch = 0 : i64, scratch_operands = 0 : i64, tpu.core_type = #tpu.core_type<tc>, window_params = [{transform_indices = @transform_0, window_bounds = array<i64: 1, 8, 32>}, {transform_indices = @transform_1, window_bounds = array<i64: 1, 1, 8>}, {pipeline_mode = #tpu.pipeline_mode<synchronous>, transform_indices = @transform_2, window_bounds = array<i64: 5, 1, 32>}, {pipeline_mode = #tpu.pipeline_mode<synchronous>, transform_indices = @transform_3, window_bounds = array<i64: 5, 1, 32>}, {pipeline_mode = #tpu.pipeline_mode<synchronous>, transform_indices = @transform_4, window_bounds = array<i64: 2, 32, 96>}, {pipeline_mode = #tpu.pipeline_mode<synchronous>, transform_indices = @transform_5, window_bounds = array<i64: 2, 1, 96>}, {pipeline_mode = #tpu.pipeline_mode<synchronous>, transform_indices = @transform_6, window_bounds = array<i64: 2, 32, 32>}, {pipeline_mode = #tpu.pipeline_mode<synchronous>, transform_indices = @transform_7, window_bounds = array<i64: 2, 1, 32>}, {pipeline_mode = #tpu.pipeline_mode<synchronous>, transform_indices = @transform_8, window_bounds = array<i64: 2, 32, 64>}, {pipeline_mode = #tpu.pipeline_mode<synchronous>, transform_indices = @transform_9, window_bounds = array<i64: 2, 1, 64>}, {pipeline_mode = #tpu.pipeline_mode<synchronous>, transform_indices = @transform_10, window_bounds = array<i64: 2, 64, 32>}, {pipeline_mode = #tpu.pipeline_mode<synchronous>, transform_indices = @transform_11, window_bounds = array<i64: 2, 1, 32>}, {transform_indices = @transform_12, window_bounds = array<i64: 1, 8, 32>}]} {
    %c0 = arith.constant 0 : index
    %c0_0 = arith.constant 0 : index
    %c0_1 = arith.constant 0 : index
    %0 = vector.load %arg1[%c0, %c0_0, %c0_1] : memref<1x8x32xf32, #tpu.memory_space<vmem>>, vector<1x8x32xf32>
    %1 = vector.shape_cast %0 : vector<1x8x32xf32> to vector<8x32xf32>
    %c0_2 = arith.constant 0 : index
    %c0_3 = arith.constant 0 : index
    %c0_4 = arith.constant 0 : index
    %2 = vector.load %arg2[%c0_2, %c0_3, %c0_4] : memref<1x1x8xf32, #tpu.memory_space<vmem>>, vector<1x1x8xf32>
    %3 = vector.shape_cast %2 : vector<1x1x8xf32> to vector<1x8xf32>
    %c0_5 = arith.constant 0 : index
    %c0_6 = arith.constant 0 : index
    %c0_7 = arith.constant 0 : index
    %4 = vector.load %arg3[%c0_5, %c0_6, %c0_7] : memref<5x1x32xf32, #tpu.memory_space<vmem>>, vector<1x1x32xf32>
    %5 = vector.shape_cast %4 : vector<1x1x32xf32> to vector<1x32xf32>
    %c0_8 = arith.constant 0 : index
    %c0_9 = arith.constant 0 : index
    %c0_10 = arith.constant 0 : index
    %6 = vector.load %arg4[%c0_8, %c0_9, %c0_10] : memref<5x1x32xf32, #tpu.memory_space<vmem>>, vector<1x1x32xf32>
    %7 = vector.shape_cast %6 : vector<1x1x32xf32> to vector<1x32xf32>
    %cst = arith.constant dense<0.000000e+00> : vector<8xf32>
    %8 = vector.multi_reduction <add>, %1, %cst [1] : vector<8x32xf32> to vector<8xf32>
    %9 = vector.shape_cast %8 : vector<8xf32> to vector<8x1xf32>
    %cst_11 = arith.constant 3.200000e+01 : f32
    %10 = vector.broadcast %cst_11 : f32 to vector<8x1xf32>
    %11 = arith.divf %9, %10 : vector<8x1xf32>
    %12 = vector.broadcast %11 : vector<8x1xf32> to vector<8x32xf32>
    %13 = arith.subf %1, %12 : vector<8x32xf32>
    %14 = arith.mulf %13, %13 : vector<8x32xf32>
    %cst_12 = arith.constant dense<0.000000e+00> : vector<8xf32>
    %15 = vector.multi_reduction <add>, %14, %cst_12 [1] : vector<8x32xf32> to vector<8xf32>
    %16 = vector.shape_cast %15 : vector<8xf32> to vector<8x1xf32>
    %cst_13 = arith.constant 3.100000e+01 : f32
    %17 = vector.broadcast %cst_13 : f32 to vector<8x1xf32>
    %18 = arith.divf %16, %17 : vector<8x1xf32>
    %19 = math.sqrt %18 : vector<8x1xf32>
    %cst_14 = arith.constant 9.99999997E-7 : f32
    %20 = vector.broadcast %cst_14 : f32 to vector<8x1xf32>
    %21 = arith.addf %19, %20 : vector<8x1xf32>
    %22 = tpu.reciprocal %21 {approx = true} : vector<8x1xf32> -> vector<8x1xf32>
    %23 = vector.broadcast %11 : vector<8x1xf32> to vector<8x32xf32>
    %24 = arith.subf %1, %23 : vector<8x32xf32>
    %25 = vector.broadcast %5 : vector<1x32xf32> to vector<8x32xf32>
    %26 = arith.mulf %25, %24 : vector<8x32xf32>
    %27 = vector.broadcast %22 : vector<8x1xf32> to vector<8x32xf32>
    %28 = arith.mulf %26, %27 : vector<8x32xf32>
    %29 = vector.broadcast %7 : vector<1x32xf32> to vector<8x32xf32>
    %30 = arith.addf %28, %29 : vector<8x32xf32>
    %c0_15 = arith.constant 0 : index
    %c0_16 = arith.constant 0 : index
    %c0_17 = arith.constant 0 : index
    %31 = vector.load %arg5[%c0_15, %c0_16, %c0_17] : memref<2x32x96xf32, #tpu.memory_space<vmem>>, vector<1x32x96xf32>
    %32 = vector.shape_cast %31 : vector<1x32x96xf32> to vector<32x96xf32>
    %cst_18 = arith.constant dense<0.000000e+00> : vector<8x96xf32>
    %33 = tpu.matmul %30, %32, %cst_18 {dimension_numbers = #tpu.dot_dimension_numbers<[1], [0], [0], [1], [0, 0, 1, 1], [], []>} : vector<8x32xf32>, vector<32x96xf32>, vector<8x96xf32> -> vector<8x96xf32>
    %c0_19 = arith.constant 0 : index
    %c0_20 = arith.constant 0 : index
    %c0_21 = arith.constant 0 : index
    %34 = vector.load %arg6[%c0_19, %c0_20, %c0_21] : memref<2x1x96xf32, #tpu.memory_space<vmem>>, vector<1x1x96xf32>
    %35 = vector.shape_cast %34 : vector<1x1x96xf32> to vector<1x96xf32>
    %36 = vector.broadcast %35 : vector<1x96xf32> to vector<8x96xf32>
    %37 = arith.addf %33, %36 : vector<8x96xf32>
    %38 = vector.extract_strided_slice %37 {offsets = [0, 0], sizes = [8, 32], strides = [1, 1]} : vector<8x96xf32> to vector<8x32xf32>
    %cst_22 = arith.constant 0.353553385 : f32
    %39 = vector.broadcast %cst_22 : f32 to vector<8x32xf32>
    %40 = arith.mulf %38, %39 : vector<8x32xf32>
    %41 = vector.extract_strided_slice %37 {offsets = [0, 32], sizes = [8, 32], strides = [1, 1]} : vector<8x96xf32> to vector<8x32xf32>
    %42 = vector.extract_strided_slice %37 {offsets = [0, 64], sizes = [8, 32], strides = [1, 1]} : vector<8x96xf32> to vector<8x32xf32>
    %43 = vector.extract_strided_slice %40 {offsets = [0, 0], sizes = [8, 8], strides = [1, 1]} : vector<8x32xf32> to vector<8x8xf32>
    %44 = vector.extract_strided_slice %40 {offsets = [0, 8], sizes = [8, 8], strides = [1, 1]} : vector<8x32xf32> to vector<8x8xf32>
    %45 = vector.extract_strided_slice %40 {offsets = [0, 16], sizes = [8, 8], strides = [1, 1]} : vector<8x32xf32> to vector<8x8xf32>
    %46 = vector.extract_strided_slice %40 {offsets = [0, 24], sizes = [8, 8], strides = [1, 1]} : vector<8x32xf32> to vector<8x8xf32>
    %47 = vector.shape_cast %43 : vector<8x8xf32> to vector<1x8x8xf32>
    %48 = vector.shape_cast %44 : vector<8x8xf32> to vector<1x8x8xf32>
    %49 = vector.shape_cast %45 : vector<8x8xf32> to vector<1x8x8xf32>
    %50 = vector.shape_cast %46 : vector<8x8xf32> to vector<1x8x8xf32>
    %51 = tpu.concatenate %47, %48, %49, %50 in 0 : vector<1x8x8xf32>, vector<1x8x8xf32>, vector<1x8x8xf32>, vector<1x8x8xf32> -> vector<4x8x8xf32>
    %52 = vector.extract_strided_slice %41 {offsets = [0, 0], sizes = [8, 8], strides = [1, 1]} : vector<8x32xf32> to vector<8x8xf32>
    %53 = vector.extract_strided_slice %41 {offsets = [0, 8], sizes = [8, 8], strides = [1, 1]} : vector<8x32xf32> to vector<8x8xf32>
    %54 = vector.extract_strided_slice %41 {offsets = [0, 16], sizes = [8, 8], strides = [1, 1]} : vector<8x32xf32> to vector<8x8xf32>
    %55 = vector.extract_strided_slice %41 {offsets = [0, 24], sizes = [8, 8], strides = [1, 1]} : vector<8x32xf32> to vector<8x8xf32>
    %56 = vector.shape_cast %52 : vector<8x8xf32> to vector<1x8x8xf32>
    %57 = vector.shape_cast %53 : vector<8x8xf32> to vector<1x8x8xf32>
    %58 = vector.shape_cast %54 : vector<8x8xf32> to vector<1x8x8xf32>
    %59 = vector.shape_cast %55 : vector<8x8xf32> to vector<1x8x8xf32>
    %60 = tpu.concatenate %56, %57, %58, %59 in 0 : vector<1x8x8xf32>, vector<1x8x8xf32>, vector<1x8x8xf32>, vector<1x8x8xf32> -> vector<4x8x8xf32>
    %61 = vector.extract_strided_slice %42 {offsets = [0, 0], sizes = [8, 8], strides = [1, 1]} : vector<8x32xf32> to vector<8x8xf32>
    %62 = vector.extract_strided_slice %42 {offsets = [0, 8], sizes = [8, 8], strides = [1, 1]} : vector<8x32xf32> to vector<8x8xf32>
    %63 = vector.extract_strided_slice %42 {offsets = [0, 16], sizes = [8, 8], strides = [1, 1]} : vector<8x32xf32> to vector<8x8xf32>
    %64 = vector.extract_strided_slice %42 {offsets = [0, 24], sizes = [8, 8], strides = [1, 1]} : vector<8x32xf32> to vector<8x8xf32>
    %65 = vector.shape_cast %61 : vector<8x8xf32> to vector<1x8x8xf32>
    %66 = vector.shape_cast %62 : vector<8x8xf32> to vector<1x8x8xf32>
    %67 = vector.shape_cast %63 : vector<8x8xf32> to vector<1x8x8xf32>
    %68 = vector.shape_cast %64 : vector<8x8xf32> to vector<1x8x8xf32>
    %69 = tpu.concatenate %65, %66, %67, %68 in 0 : vector<1x8x8xf32>, vector<1x8x8xf32>, vector<1x8x8xf32>, vector<1x8x8xf32> -> vector<4x8x8xf32>
    "tpu.trace_start"() <{level = 10 : i32, message = "hqd,hkd->hqk"}> : () -> ()
    %cst_23 = arith.constant dense<0.000000e+00> : vector<4x8x8xf32>
    %70 = tpu.matmul %51, %60, %cst_23 {dimension_numbers = #tpu.dot_dimension_numbers<[2], [2], [1], [1], [0, 0, 0, 1, 1, 1], [0], [0]>} : vector<4x8x8xf32>, vector<4x8x8xf32>, vector<4x8x8xf32> -> vector<4x8x8xf32>
    "tpu.trace_stop"() : () -> ()
    %71 = vector.shape_cast %3 : vector<1x8xf32> to vector<1x1x8xf32>
    %72 = vector.broadcast %71 : vector<1x1x8xf32> to vector<4x8x8xf32>
    %73 = arith.addf %70, %72 : vector<4x8x8xf32>
    %cst_24 = arith.constant dense<0xFF800000> : vector<4x8xf32>
    %74 = vector.multi_reduction <maximumf>, %73, %cst_24 [2] : vector<4x8x8xf32> to vector<4x8xf32>
    %75 = vector.shape_cast %74 : vector<4x8xf32> to vector<4x8x1xf32>
    %76 = vector.broadcast %75 : vector<4x8x1xf32> to vector<4x8x8xf32>
    %77 = arith.subf %73, %76 : vector<4x8x8xf32>
    %78 = math.exp %77 : vector<4x8x8xf32>
    %cst_25 = arith.constant dense<0.000000e+00> : vector<4x8xf32>
    %79 = vector.multi_reduction <add>, %78, %cst_25 [2] : vector<4x8x8xf32> to vector<4x8xf32>
    %80 = vector.shape_cast %79 : vector<4x8xf32> to vector<4x8x1xf32>
    %81 = tpu.reciprocal %80 {approx = true} : vector<4x8x1xf32> -> vector<4x8x1xf32>
    %82 = vector.broadcast %81 : vector<4x8x1xf32> to vector<4x8x8xf32>
    %83 = arith.mulf %78, %82 : vector<4x8x8xf32>
    "tpu.trace_start"() <{level = 10 : i32, message = "hqk,hkd->hqd"}> : () -> ()
    %cst_26 = arith.constant dense<0.000000e+00> : vector<4x8x8xf32>
    %84 = tpu.matmul %83, %69, %cst_26 {dimension_numbers = #tpu.dot_dimension_numbers<[2], [1], [1], [2], [0, 0, 0, 1, 1, 2], [0], [0]>} : vector<4x8x8xf32>, vector<4x8x8xf32>, vector<4x8x8xf32> -> vector<4x8x8xf32>
    "tpu.trace_stop"() : () -> ()
    %85 = vector.extract_strided_slice %84 {offsets = [0, 0, 0], sizes = [1, 8, 8], strides = [1, 1, 1]} : vector<4x8x8xf32> to vector<1x8x8xf32>
    %86 = vector.shape_cast %85 : vector<1x8x8xf32> to vector<8x8xf32>
    %87 = vector.extract_strided_slice %84 {offsets = [1, 0, 0], sizes = [1, 8, 8], strides = [1, 1, 1]} : vector<4x8x8xf32> to vector<1x8x8xf32>
    %88 = vector.shape_cast %87 : vector<1x8x8xf32> to vector<8x8xf32>
    %89 = vector.extract_strided_slice %84 {offsets = [2, 0, 0], sizes = [1, 8, 8], strides = [1, 1, 1]} : vector<4x8x8xf32> to vector<1x8x8xf32>
    %90 = vector.shape_cast %89 : vector<1x8x8xf32> to vector<8x8xf32>
    %91 = vector.extract_strided_slice %84 {offsets = [3, 0, 0], sizes = [1, 8, 8], strides = [1, 1, 1]} : vector<4x8x8xf32> to vector<1x8x8xf32>
    %92 = vector.shape_cast %91 : vector<1x8x8xf32> to vector<8x8xf32>
    %93 = tpu.concatenate %86, %88, %90, %92 in 1 : vector<8x8xf32>, vector<8x8xf32>, vector<8x8xf32>, vector<8x8xf32> -> vector<8x32xf32>
    %c0_27 = arith.constant 0 : index
    %c0_28 = arith.constant 0 : index
    %c0_29 = arith.constant 0 : index
    %94 = vector.load %arg7[%c0_27, %c0_28, %c0_29] : memref<2x32x32xf32, #tpu.memory_space<vmem>>, vector<1x32x32xf32>
    %95 = vector.shape_cast %94 : vector<1x32x32xf32> to vector<32x32xf32>
    %cst_30 = arith.constant dense<0.000000e+00> : vector<8x32xf32>
    %96 = tpu.matmul %93, %95, %cst_30 {dimension_numbers = #tpu.dot_dimension_numbers<[1], [0], [0], [1], [0, 0, 1, 1], [], []>} : vector<8x32xf32>, vector<32x32xf32>, vector<8x32xf32> -> vector<8x32xf32>
    %c0_31 = arith.constant 0 : index
    %c0_32 = arith.constant 0 : index
    %c0_33 = arith.constant 0 : index
    %97 = vector.load %arg8[%c0_31, %c0_32, %c0_33] : memref<2x1x32xf32, #tpu.memory_space<vmem>>, vector<1x1x32xf32>
    %98 = vector.shape_cast %97 : vector<1x1x32xf32> to vector<1x32xf32>
    %99 = vector.broadcast %98 : vector<1x32xf32> to vector<8x32xf32>
    %100 = arith.addf %96, %99 : vector<8x32xf32>
    %101 = arith.addf %1, %100 : vector<8x32xf32>
    %c1 = arith.constant 1 : index
    %c0_34 = arith.constant 0 : index
    %c0_35 = arith.constant 0 : index
    %102 = vector.load %arg3[%c1, %c0_34, %c0_35] : memref<5x1x32xf32, #tpu.memory_space<vmem>>, vector<1x1x32xf32>
    %103 = vector.shape_cast %102 : vector<1x1x32xf32> to vector<1x32xf32>
    %c1_36 = arith.constant 1 : index
    %c0_37 = arith.constant 0 : index
    %c0_38 = arith.constant 0 : index
    %104 = vector.load %arg4[%c1_36, %c0_37, %c0_38] : memref<5x1x32xf32, #tpu.memory_space<vmem>>, vector<1x1x32xf32>
    %105 = vector.shape_cast %104 : vector<1x1x32xf32> to vector<1x32xf32>
    %cst_39 = arith.constant dense<0.000000e+00> : vector<8xf32>
    %106 = vector.multi_reduction <add>, %101, %cst_39 [1] : vector<8x32xf32> to vector<8xf32>
    %107 = vector.shape_cast %106 : vector<8xf32> to vector<8x1xf32>
    %cst_40 = arith.constant 3.200000e+01 : f32
    %108 = vector.broadcast %cst_40 : f32 to vector<8x1xf32>
    %109 = arith.divf %107, %108 : vector<8x1xf32>
    %110 = vector.broadcast %109 : vector<8x1xf32> to vector<8x32xf32>
    %111 = arith.subf %101, %110 : vector<8x32xf32>
    %112 = arith.mulf %111, %111 : vector<8x32xf32>
    %cst_41 = arith.constant dense<0.000000e+00> : vector<8xf32>
    %113 = vector.multi_reduction <add>, %112, %cst_41 [1] : vector<8x32xf32> to vector<8xf32>
    %114 = vector.shape_cast %113 : vector<8xf32> to vector<8x1xf32>
    %cst_42 = arith.constant 3.100000e+01 : f32
    %115 = vector.broadcast %cst_42 : f32 to vector<8x1xf32>
    %116 = arith.divf %114, %115 : vector<8x1xf32>
    %117 = math.sqrt %116 : vector<8x1xf32>
    %cst_43 = arith.constant 9.99999997E-7 : f32
    %118 = vector.broadcast %cst_43 : f32 to vector<8x1xf32>
    %119 = arith.addf %117, %118 : vector<8x1xf32>
    %120 = tpu.reciprocal %119 {approx = true} : vector<8x1xf32> -> vector<8x1xf32>
    %121 = vector.broadcast %109 : vector<8x1xf32> to vector<8x32xf32>
    %122 = arith.subf %101, %121 : vector<8x32xf32>
    %123 = vector.broadcast %103 : vector<1x32xf32> to vector<8x32xf32>
    %124 = arith.mulf %123, %122 : vector<8x32xf32>
    %125 = vector.broadcast %120 : vector<8x1xf32> to vector<8x32xf32>
    %126 = arith.mulf %124, %125 : vector<8x32xf32>
    %127 = vector.broadcast %105 : vector<1x32xf32> to vector<8x32xf32>
    %128 = arith.addf %126, %127 : vector<8x32xf32>
    %c0_44 = arith.constant 0 : index
    %c0_45 = arith.constant 0 : index
    %c0_46 = arith.constant 0 : index
    %129 = vector.load %arg9[%c0_44, %c0_45, %c0_46] : memref<2x32x64xf32, #tpu.memory_space<vmem>>, vector<1x32x64xf32>
    %130 = vector.shape_cast %129 : vector<1x32x64xf32> to vector<32x64xf32>
    %cst_47 = arith.constant dense<0.000000e+00> : vector<8x64xf32>
    %131 = tpu.matmul %128, %130, %cst_47 {dimension_numbers = #tpu.dot_dimension_numbers<[1], [0], [0], [1], [0, 0, 1, 1], [], []>} : vector<8x32xf32>, vector<32x64xf32>, vector<8x64xf32> -> vector<8x64xf32>
    %c0_48 = arith.constant 0 : index
    %c0_49 = arith.constant 0 : index
    %c0_50 = arith.constant 0 : index
    %132 = vector.load %arg10[%c0_48, %c0_49, %c0_50] : memref<2x1x64xf32, #tpu.memory_space<vmem>>, vector<1x1x64xf32>
    %133 = vector.shape_cast %132 : vector<1x1x64xf32> to vector<1x64xf32>
    %134 = vector.broadcast %133 : vector<1x64xf32> to vector<8x64xf32>
    %135 = arith.addf %131, %134 : vector<8x64xf32>
    %cst_51 = arith.constant 0.000000e+00 : f32
    %136 = vector.broadcast %cst_51 : f32 to vector<8x64xf32>
    %137 = arith.maximumf %135, %136 : vector<8x64xf32>
    %c0_52 = arith.constant 0 : index
    %c0_53 = arith.constant 0 : index
    %c0_54 = arith.constant 0 : index
    %138 = vector.load %arg11[%c0_52, %c0_53, %c0_54] : memref<2x64x32xf32, #tpu.memory_space<vmem>>, vector<1x64x32xf32>
    %139 = vector.shape_cast %138 : vector<1x64x32xf32> to vector<64x32xf32>
    %cst_55 = arith.constant dense<0.000000e+00> : vector<8x32xf32>
    %140 = tpu.matmul %137, %139, %cst_55 {dimension_numbers = #tpu.dot_dimension_numbers<[1], [0], [0], [1], [0, 0, 1, 1], [], []>} : vector<8x64xf32>, vector<64x32xf32>, vector<8x32xf32> -> vector<8x32xf32>
    %c0_56 = arith.constant 0 : index
    %c0_57 = arith.constant 0 : index
    %c0_58 = arith.constant 0 : index
    %141 = vector.load %arg12[%c0_56, %c0_57, %c0_58] : memref<2x1x32xf32, #tpu.memory_space<vmem>>, vector<1x1x32xf32>
    %142 = vector.shape_cast %141 : vector<1x1x32xf32> to vector<1x32xf32>
    %143 = vector.broadcast %142 : vector<1x32xf32> to vector<8x32xf32>
    %144 = arith.addf %140, %143 : vector<8x32xf32>
    %145 = arith.addf %101, %144 : vector<8x32xf32>
    %c2 = arith.constant 2 : index
    %c0_59 = arith.constant 0 : index
    %c0_60 = arith.constant 0 : index
    %146 = vector.load %arg3[%c2, %c0_59, %c0_60] : memref<5x1x32xf32, #tpu.memory_space<vmem>>, vector<1x1x32xf32>
    %147 = vector.shape_cast %146 : vector<1x1x32xf32> to vector<1x32xf32>
    %c2_61 = arith.constant 2 : index
    %c0_62 = arith.constant 0 : index
    %c0_63 = arith.constant 0 : index
    %148 = vector.load %arg4[%c2_61, %c0_62, %c0_63] : memref<5x1x32xf32, #tpu.memory_space<vmem>>, vector<1x1x32xf32>
    %149 = vector.shape_cast %148 : vector<1x1x32xf32> to vector<1x32xf32>
    %cst_64 = arith.constant dense<0.000000e+00> : vector<8xf32>
    %150 = vector.multi_reduction <add>, %145, %cst_64 [1] : vector<8x32xf32> to vector<8xf32>
    %151 = vector.shape_cast %150 : vector<8xf32> to vector<8x1xf32>
    %cst_65 = arith.constant 3.200000e+01 : f32
    %152 = vector.broadcast %cst_65 : f32 to vector<8x1xf32>
    %153 = arith.divf %151, %152 : vector<8x1xf32>
    %154 = vector.broadcast %153 : vector<8x1xf32> to vector<8x32xf32>
    %155 = arith.subf %145, %154 : vector<8x32xf32>
    %156 = arith.mulf %155, %155 : vector<8x32xf32>
    %cst_66 = arith.constant dense<0.000000e+00> : vector<8xf32>
    %157 = vector.multi_reduction <add>, %156, %cst_66 [1] : vector<8x32xf32> to vector<8xf32>
    %158 = vector.shape_cast %157 : vector<8xf32> to vector<8x1xf32>
    %cst_67 = arith.constant 3.100000e+01 : f32
    %159 = vector.broadcast %cst_67 : f32 to vector<8x1xf32>
    %160 = arith.divf %158, %159 : vector<8x1xf32>
    %161 = math.sqrt %160 : vector<8x1xf32>
    %cst_68 = arith.constant 9.99999997E-7 : f32
    %162 = vector.broadcast %cst_68 : f32 to vector<8x1xf32>
    %163 = arith.addf %161, %162 : vector<8x1xf32>
    %164 = tpu.reciprocal %163 {approx = true} : vector<8x1xf32> -> vector<8x1xf32>
    %165 = vector.broadcast %153 : vector<8x1xf32> to vector<8x32xf32>
    %166 = arith.subf %145, %165 : vector<8x32xf32>
    %167 = vector.broadcast %147 : vector<1x32xf32> to vector<8x32xf32>
    %168 = arith.mulf %167, %166 : vector<8x32xf32>
    %169 = vector.broadcast %164 : vector<8x1xf32> to vector<8x32xf32>
    %170 = arith.mulf %168, %169 : vector<8x32xf32>
    %171 = vector.broadcast %149 : vector<1x32xf32> to vector<8x32xf32>
    %172 = arith.addf %170, %171 : vector<8x32xf32>
    %c1_69 = arith.constant 1 : index
    %c0_70 = arith.constant 0 : index
    %c0_71 = arith.constant 0 : index
    %173 = vector.load %arg5[%c1_69, %c0_70, %c0_71] : memref<2x32x96xf32, #tpu.memory_space<vmem>>, vector<1x32x96xf32>
    %174 = vector.shape_cast %173 : vector<1x32x96xf32> to vector<32x96xf32>
    %cst_72 = arith.constant dense<0.000000e+00> : vector<8x96xf32>
    %175 = tpu.matmul %172, %174, %cst_72 {dimension_numbers = #tpu.dot_dimension_numbers<[1], [0], [0], [1], [0, 0, 1, 1], [], []>} : vector<8x32xf32>, vector<32x96xf32>, vector<8x96xf32> -> vector<8x96xf32>
    %c1_73 = arith.constant 1 : index
    %c0_74 = arith.constant 0 : index
    %c0_75 = arith.constant 0 : index
    %176 = vector.load %arg6[%c1_73, %c0_74, %c0_75] : memref<2x1x96xf32, #tpu.memory_space<vmem>>, vector<1x1x96xf32>
    %177 = vector.shape_cast %176 : vector<1x1x96xf32> to vector<1x96xf32>
    %178 = vector.broadcast %177 : vector<1x96xf32> to vector<8x96xf32>
    %179 = arith.addf %175, %178 : vector<8x96xf32>
    %180 = vector.extract_strided_slice %179 {offsets = [0, 0], sizes = [8, 32], strides = [1, 1]} : vector<8x96xf32> to vector<8x32xf32>
    %cst_76 = arith.constant 0.353553385 : f32
    %181 = vector.broadcast %cst_76 : f32 to vector<8x32xf32>
    %182 = arith.mulf %180, %181 : vector<8x32xf32>
    %183 = vector.extract_strided_slice %179 {offsets = [0, 32], sizes = [8, 32], strides = [1, 1]} : vector<8x96xf32> to vector<8x32xf32>
    %184 = vector.extract_strided_slice %179 {offsets = [0, 64], sizes = [8, 32], strides = [1, 1]} : vector<8x96xf32> to vector<8x32xf32>
    %185 = vector.extract_strided_slice %182 {offsets = [0, 0], sizes = [8, 8], strides = [1, 1]} : vector<8x32xf32> to vector<8x8xf32>
    %186 = vector.extract_strided_slice %182 {offsets = [0, 8], sizes = [8, 8], strides = [1, 1]} : vector<8x32xf32> to vector<8x8xf32>
    %187 = vector.extract_strided_slice %182 {offsets = [0, 16], sizes = [8, 8], strides = [1, 1]} : vector<8x32xf32> to vector<8x8xf32>
    %188 = vector.extract_strided_slice %182 {offsets = [0, 24], sizes = [8, 8], strides = [1, 1]} : vector<8x32xf32> to vector<8x8xf32>
    %189 = vector.shape_cast %185 : vector<8x8xf32> to vector<1x8x8xf32>
    %190 = vector.shape_cast %186 : vector<8x8xf32> to vector<1x8x8xf32>
    %191 = vector.shape_cast %187 : vector<8x8xf32> to vector<1x8x8xf32>
    %192 = vector.shape_cast %188 : vector<8x8xf32> to vector<1x8x8xf32>
    %193 = tpu.concatenate %189, %190, %191, %192 in 0 : vector<1x8x8xf32>, vector<1x8x8xf32>, vector<1x8x8xf32>, vector<1x8x8xf32> -> vector<4x8x8xf32>
    %194 = vector.extract_strided_slice %183 {offsets = [0, 0], sizes = [8, 8], strides = [1, 1]} : vector<8x32xf32> to vector<8x8xf32>
    %195 = vector.extract_strided_slice %183 {offsets = [0, 8], sizes = [8, 8], strides = [1, 1]} : vector<8x32xf32> to vector<8x8xf32>
    %196 = vector.extract_strided_slice %183 {offsets = [0, 16], sizes = [8, 8], strides = [1, 1]} : vector<8x32xf32> to vector<8x8xf32>
    %197 = vector.extract_strided_slice %183 {offsets = [0, 24], sizes = [8, 8], strides = [1, 1]} : vector<8x32xf32> to vector<8x8xf32>
    %198 = vector.shape_cast %194 : vector<8x8xf32> to vector<1x8x8xf32>
    %199 = vector.shape_cast %195 : vector<8x8xf32> to vector<1x8x8xf32>
    %200 = vector.shape_cast %196 : vector<8x8xf32> to vector<1x8x8xf32>
    %201 = vector.shape_cast %197 : vector<8x8xf32> to vector<1x8x8xf32>
    %202 = tpu.concatenate %198, %199, %200, %201 in 0 : vector<1x8x8xf32>, vector<1x8x8xf32>, vector<1x8x8xf32>, vector<1x8x8xf32> -> vector<4x8x8xf32>
    %203 = vector.extract_strided_slice %184 {offsets = [0, 0], sizes = [8, 8], strides = [1, 1]} : vector<8x32xf32> to vector<8x8xf32>
    %204 = vector.extract_strided_slice %184 {offsets = [0, 8], sizes = [8, 8], strides = [1, 1]} : vector<8x32xf32> to vector<8x8xf32>
    %205 = vector.extract_strided_slice %184 {offsets = [0, 16], sizes = [8, 8], strides = [1, 1]} : vector<8x32xf32> to vector<8x8xf32>
    %206 = vector.extract_strided_slice %184 {offsets = [0, 24], sizes = [8, 8], strides = [1, 1]} : vector<8x32xf32> to vector<8x8xf32>
    %207 = vector.shape_cast %203 : vector<8x8xf32> to vector<1x8x8xf32>
    %208 = vector.shape_cast %204 : vector<8x8xf32> to vector<1x8x8xf32>
    %209 = vector.shape_cast %205 : vector<8x8xf32> to vector<1x8x8xf32>
    %210 = vector.shape_cast %206 : vector<8x8xf32> to vector<1x8x8xf32>
    %211 = tpu.concatenate %207, %208, %209, %210 in 0 : vector<1x8x8xf32>, vector<1x8x8xf32>, vector<1x8x8xf32>, vector<1x8x8xf32> -> vector<4x8x8xf32>
    "tpu.trace_start"() <{level = 10 : i32, message = "hqd,hkd->hqk"}> : () -> ()
    %cst_77 = arith.constant dense<0.000000e+00> : vector<4x8x8xf32>
    %212 = tpu.matmul %193, %202, %cst_77 {dimension_numbers = #tpu.dot_dimension_numbers<[2], [2], [1], [1], [0, 0, 0, 1, 1, 1], [0], [0]>} : vector<4x8x8xf32>, vector<4x8x8xf32>, vector<4x8x8xf32> -> vector<4x8x8xf32>
    "tpu.trace_stop"() : () -> ()
    %213 = vector.shape_cast %3 : vector<1x8xf32> to vector<1x1x8xf32>
    %214 = vector.broadcast %213 : vector<1x1x8xf32> to vector<4x8x8xf32>
    %215 = arith.addf %212, %214 : vector<4x8x8xf32>
    %cst_78 = arith.constant dense<0xFF800000> : vector<4x8xf32>
    %216 = vector.multi_reduction <maximumf>, %215, %cst_78 [2] : vector<4x8x8xf32> to vector<4x8xf32>
    %217 = vector.shape_cast %216 : vector<4x8xf32> to vector<4x8x1xf32>
    %218 = vector.broadcast %217 : vector<4x8x1xf32> to vector<4x8x8xf32>
    %219 = arith.subf %215, %218 : vector<4x8x8xf32>
    %220 = math.exp %219 : vector<4x8x8xf32>
    %cst_79 = arith.constant dense<0.000000e+00> : vector<4x8xf32>
    %221 = vector.multi_reduction <add>, %220, %cst_79 [2] : vector<4x8x8xf32> to vector<4x8xf32>
    %222 = vector.shape_cast %221 : vector<4x8xf32> to vector<4x8x1xf32>
    %223 = tpu.reciprocal %222 {approx = true} : vector<4x8x1xf32> -> vector<4x8x1xf32>
    %224 = vector.broadcast %223 : vector<4x8x1xf32> to vector<4x8x8xf32>
    %225 = arith.mulf %220, %224 : vector<4x8x8xf32>
    "tpu.trace_start"() <{level = 10 : i32, message = "hqk,hkd->hqd"}> : () -> ()
    %cst_80 = arith.constant dense<0.000000e+00> : vector<4x8x8xf32>
    %226 = tpu.matmul %225, %211, %cst_80 {dimension_numbers = #tpu.dot_dimension_numbers<[2], [1], [1], [2], [0, 0, 0, 1, 1, 2], [0], [0]>} : vector<4x8x8xf32>, vector<4x8x8xf32>, vector<4x8x8xf32> -> vector<4x8x8xf32>
    "tpu.trace_stop"() : () -> ()
    %227 = vector.extract_strided_slice %226 {offsets = [0, 0, 0], sizes = [1, 8, 8], strides = [1, 1, 1]} : vector<4x8x8xf32> to vector<1x8x8xf32>
    %228 = vector.shape_cast %227 : vector<1x8x8xf32> to vector<8x8xf32>
    %229 = vector.extract_strided_slice %226 {offsets = [1, 0, 0], sizes = [1, 8, 8], strides = [1, 1, 1]} : vector<4x8x8xf32> to vector<1x8x8xf32>
    %230 = vector.shape_cast %229 : vector<1x8x8xf32> to vector<8x8xf32>
    %231 = vector.extract_strided_slice %226 {offsets = [2, 0, 0], sizes = [1, 8, 8], strides = [1, 1, 1]} : vector<4x8x8xf32> to vector<1x8x8xf32>
    %232 = vector.shape_cast %231 : vector<1x8x8xf32> to vector<8x8xf32>
    %233 = vector.extract_strided_slice %226 {offsets = [3, 0, 0], sizes = [1, 8, 8], strides = [1, 1, 1]} : vector<4x8x8xf32> to vector<1x8x8xf32>
    %234 = vector.shape_cast %233 : vector<1x8x8xf32> to vector<8x8xf32>
    %235 = tpu.concatenate %228, %230, %232, %234 in 1 : vector<8x8xf32>, vector<8x8xf32>, vector<8x8xf32>, vector<8x8xf32> -> vector<8x32xf32>
    %c1_81 = arith.constant 1 : index
    %c0_82 = arith.constant 0 : index
    %c0_83 = arith.constant 0 : index
    %236 = vector.load %arg7[%c1_81, %c0_82, %c0_83] : memref<2x32x32xf32, #tpu.memory_space<vmem>>, vector<1x32x32xf32>
    %237 = vector.shape_cast %236 : vector<1x32x32xf32> to vector<32x32xf32>
    %cst_84 = arith.constant dense<0.000000e+00> : vector<8x32xf32>
    %238 = tpu.matmul %235, %237, %cst_84 {dimension_numbers = #tpu.dot_dimension_numbers<[1], [0], [0], [1], [0, 0, 1, 1], [], []>} : vector<8x32xf32>, vector<32x32xf32>, vector<8x32xf32> -> vector<8x32xf32>
    %c1_85 = arith.constant 1 : index
    %c0_86 = arith.constant 0 : index
    %c0_87 = arith.constant 0 : index
    %239 = vector.load %arg8[%c1_85, %c0_86, %c0_87] : memref<2x1x32xf32, #tpu.memory_space<vmem>>, vector<1x1x32xf32>
    %240 = vector.shape_cast %239 : vector<1x1x32xf32> to vector<1x32xf32>
    %241 = vector.broadcast %240 : vector<1x32xf32> to vector<8x32xf32>
    %242 = arith.addf %238, %241 : vector<8x32xf32>
    %243 = arith.addf %145, %242 : vector<8x32xf32>
    %c3 = arith.constant 3 : index
    %c0_88 = arith.constant 0 : index
    %c0_89 = arith.constant 0 : index
    %244 = vector.load %arg3[%c3, %c0_88, %c0_89] : memref<5x1x32xf32, #tpu.memory_space<vmem>>, vector<1x1x32xf32>
    %245 = vector.shape_cast %244 : vector<1x1x32xf32> to vector<1x32xf32>
    %c3_90 = arith.constant 3 : index
    %c0_91 = arith.constant 0 : index
    %c0_92 = arith.constant 0 : index
    %246 = vector.load %arg4[%c3_90, %c0_91, %c0_92] : memref<5x1x32xf32, #tpu.memory_space<vmem>>, vector<1x1x32xf32>
    %247 = vector.shape_cast %246 : vector<1x1x32xf32> to vector<1x32xf32>
    %cst_93 = arith.constant dense<0.000000e+00> : vector<8xf32>
    %248 = vector.multi_reduction <add>, %243, %cst_93 [1] : vector<8x32xf32> to vector<8xf32>
    %249 = vector.shape_cast %248 : vector<8xf32> to vector<8x1xf32>
    %cst_94 = arith.constant 3.200000e+01 : f32
    %250 = vector.broadcast %cst_94 : f32 to vector<8x1xf32>
    %251 = arith.divf %249, %250 : vector<8x1xf32>
    %252 = vector.broadcast %251 : vector<8x1xf32> to vector<8x32xf32>
    %253 = arith.subf %243, %252 : vector<8x32xf32>
    %254 = arith.mulf %253, %253 : vector<8x32xf32>
    %cst_95 = arith.constant dense<0.000000e+00> : vector<8xf32>
    %255 = vector.multi_reduction <add>, %254, %cst_95 [1] : vector<8x32xf32> to vector<8xf32>
    %256 = vector.shape_cast %255 : vector<8xf32> to vector<8x1xf32>
    %cst_96 = arith.constant 3.100000e+01 : f32
    %257 = vector.broadcast %cst_96 : f32 to vector<8x1xf32>
    %258 = arith.divf %256, %257 : vector<8x1xf32>
    %259 = math.sqrt %258 : vector<8x1xf32>
    %cst_97 = arith.constant 9.99999997E-7 : f32
    %260 = vector.broadcast %cst_97 : f32 to vector<8x1xf32>
    %261 = arith.addf %259, %260 : vector<8x1xf32>
    %262 = tpu.reciprocal %261 {approx = true} : vector<8x1xf32> -> vector<8x1xf32>
    %263 = vector.broadcast %251 : vector<8x1xf32> to vector<8x32xf32>
    %264 = arith.subf %243, %263 : vector<8x32xf32>
    %265 = vector.broadcast %245 : vector<1x32xf32> to vector<8x32xf32>
    %266 = arith.mulf %265, %264 : vector<8x32xf32>
    %267 = vector.broadcast %262 : vector<8x1xf32> to vector<8x32xf32>
    %268 = arith.mulf %266, %267 : vector<8x32xf32>
    %269 = vector.broadcast %247 : vector<1x32xf32> to vector<8x32xf32>
    %270 = arith.addf %268, %269 : vector<8x32xf32>
    %c1_98 = arith.constant 1 : index
    %c0_99 = arith.constant 0 : index
    %c0_100 = arith.constant 0 : index
    %271 = vector.load %arg9[%c1_98, %c0_99, %c0_100] : memref<2x32x64xf32, #tpu.memory_space<vmem>>, vector<1x32x64xf32>
    %272 = vector.shape_cast %271 : vector<1x32x64xf32> to vector<32x64xf32>
    %cst_101 = arith.constant dense<0.000000e+00> : vector<8x64xf32>
    %273 = tpu.matmul %270, %272, %cst_101 {dimension_numbers = #tpu.dot_dimension_numbers<[1], [0], [0], [1], [0, 0, 1, 1], [], []>} : vector<8x32xf32>, vector<32x64xf32>, vector<8x64xf32> -> vector<8x64xf32>
    %c1_102 = arith.constant 1 : index
    %c0_103 = arith.constant 0 : index
    %c0_104 = arith.constant 0 : index
    %274 = vector.load %arg10[%c1_102, %c0_103, %c0_104] : memref<2x1x64xf32, #tpu.memory_space<vmem>>, vector<1x1x64xf32>
    %275 = vector.shape_cast %274 : vector<1x1x64xf32> to vector<1x64xf32>
    %276 = vector.broadcast %275 : vector<1x64xf32> to vector<8x64xf32>
    %277 = arith.addf %273, %276 : vector<8x64xf32>
    %cst_105 = arith.constant 0.000000e+00 : f32
    %278 = vector.broadcast %cst_105 : f32 to vector<8x64xf32>
    %279 = arith.maximumf %277, %278 : vector<8x64xf32>
    %c1_106 = arith.constant 1 : index
    %c0_107 = arith.constant 0 : index
    %c0_108 = arith.constant 0 : index
    %280 = vector.load %arg11[%c1_106, %c0_107, %c0_108] : memref<2x64x32xf32, #tpu.memory_space<vmem>>, vector<1x64x32xf32>
    %281 = vector.shape_cast %280 : vector<1x64x32xf32> to vector<64x32xf32>
    %cst_109 = arith.constant dense<0.000000e+00> : vector<8x32xf32>
    %282 = tpu.matmul %279, %281, %cst_109 {dimension_numbers = #tpu.dot_dimension_numbers<[1], [0], [0], [1], [0, 0, 1, 1], [], []>} : vector<8x64xf32>, vector<64x32xf32>, vector<8x32xf32> -> vector<8x32xf32>
    %c1_110 = arith.constant 1 : index
    %c0_111 = arith.constant 0 : index
    %c0_112 = arith.constant 0 : index
    %283 = vector.load %arg12[%c1_110, %c0_111, %c0_112] : memref<2x1x32xf32, #tpu.memory_space<vmem>>, vector<1x1x32xf32>
    %284 = vector.shape_cast %283 : vector<1x1x32xf32> to vector<1x32xf32>
    %285 = vector.broadcast %284 : vector<1x32xf32> to vector<8x32xf32>
    %286 = arith.addf %282, %285 : vector<8x32xf32>
    %287 = arith.addf %243, %286 : vector<8x32xf32>
    %c4 = arith.constant 4 : index
    %c0_113 = arith.constant 0 : index
    %c0_114 = arith.constant 0 : index
    %288 = vector.load %arg3[%c4, %c0_113, %c0_114] : memref<5x1x32xf32, #tpu.memory_space<vmem>>, vector<1x1x32xf32>
    %289 = vector.shape_cast %288 : vector<1x1x32xf32> to vector<1x32xf32>
    %c4_115 = arith.constant 4 : index
    %c0_116 = arith.constant 0 : index
    %c0_117 = arith.constant 0 : index
    %290 = vector.load %arg4[%c4_115, %c0_116, %c0_117] : memref<5x1x32xf32, #tpu.memory_space<vmem>>, vector<1x1x32xf32>
    %291 = vector.shape_cast %290 : vector<1x1x32xf32> to vector<1x32xf32>
    %cst_118 = arith.constant dense<0.000000e+00> : vector<8xf32>
    %292 = vector.multi_reduction <add>, %287, %cst_118 [1] : vector<8x32xf32> to vector<8xf32>
    %293 = vector.shape_cast %292 : vector<8xf32> to vector<8x1xf32>
    %cst_119 = arith.constant 3.200000e+01 : f32
    %294 = vector.broadcast %cst_119 : f32 to vector<8x1xf32>
    %295 = arith.divf %293, %294 : vector<8x1xf32>
    %296 = vector.broadcast %295 : vector<8x1xf32> to vector<8x32xf32>
    %297 = arith.subf %287, %296 : vector<8x32xf32>
    %298 = arith.mulf %297, %297 : vector<8x32xf32>
    %cst_120 = arith.constant dense<0.000000e+00> : vector<8xf32>
    %299 = vector.multi_reduction <add>, %298, %cst_120 [1] : vector<8x32xf32> to vector<8xf32>
    %300 = vector.shape_cast %299 : vector<8xf32> to vector<8x1xf32>
    %cst_121 = arith.constant 3.100000e+01 : f32
    %301 = vector.broadcast %cst_121 : f32 to vector<8x1xf32>
    %302 = arith.divf %300, %301 : vector<8x1xf32>
    %303 = math.sqrt %302 : vector<8x1xf32>
    %cst_122 = arith.constant 9.99999997E-7 : f32
    %304 = vector.broadcast %cst_122 : f32 to vector<8x1xf32>
    %305 = arith.addf %303, %304 : vector<8x1xf32>
    %306 = tpu.reciprocal %305 {approx = true} : vector<8x1xf32> -> vector<8x1xf32>
    %307 = vector.broadcast %295 : vector<8x1xf32> to vector<8x32xf32>
    %308 = arith.subf %287, %307 : vector<8x32xf32>
    %309 = vector.broadcast %289 : vector<1x32xf32> to vector<8x32xf32>
    %310 = arith.mulf %309, %308 : vector<8x32xf32>
    %311 = vector.broadcast %306 : vector<8x1xf32> to vector<8x32xf32>
    %312 = arith.mulf %310, %311 : vector<8x32xf32>
    %313 = vector.broadcast %291 : vector<1x32xf32> to vector<8x32xf32>
    %314 = arith.addf %312, %313 : vector<8x32xf32>
    %c0_123 = arith.constant 0 : index
    %c0_124 = arith.constant 0 : index
    %c0_125 = arith.constant 0 : index
    %315 = vector.load %arg13[%c0_123, %c0_124, %c0_125] : memref<1x8x32xf32, #tpu.memory_space<vmem>>, vector<1x8x32xf32>
    %316 = vector.shape_cast %315 : vector<1x8x32xf32> to vector<8x32xf32>
    %317 = vector.shape_cast %314 : vector<8x32xf32> to vector<1x8x32xf32>
    tpu.vector_store %arg13[%c0_123, %c0_124, %c0_125], %317 {strides = array<i32>} : memref<1x8x32xf32, #tpu.memory_space<vmem>>, vector<1x8x32xf32>,
    return
  }
  func.func @transform_0(%arg0: i32) -> (i32, i32, i32) {
    %c0_i32 = arith.constant 0 : i32
    %c0_i32_0 = arith.constant 0 : i32
    %c0_i32_1 = arith.constant 0 : i32
    return %arg0, %c0_i32, %c0_i32_0 : i32, i32, i32
  }
  func.func @transform_1(%arg0: i32) -> (i32, i32, i32) {
    %c0_i32 = arith.constant 0 : i32
    %c0_i32_0 = arith.constant 0 : i32
    %c0_i32_1 = arith.constant 0 : i32
    return %arg0, %c0_i32, %c0_i32_0 : i32, i32, i32
  }
  func.func @transform_2(%arg0: i32) -> (i32, i32, i32) {
    %c0_i32 = arith.constant 0 : i32
    %c0_i32_0 = arith.constant 0 : i32
    %c0_i32_1 = arith.constant 0 : i32
    %c0_i32_2 = arith.constant 0 : i32
    return %c0_i32, %c0_i32_0, %c0_i32_1 : i32, i32, i32
  }
  func.func @transform_3(%arg0: i32) -> (i32, i32, i32) {
    %c0_i32 = arith.constant 0 : i32
    %c0_i32_0 = arith.constant 0 : i32
    %c0_i32_1 = arith.constant 0 : i32
    %c0_i32_2 = arith.constant 0 : i32
    return %c0_i32, %c0_i32_0, %c0_i32_1 : i32, i32, i32
  }
  func.func @transform_4(%arg0: i32) -> (i32, i32, i32) {
    %c0_i32 = arith.constant 0 : i32
    %c0_i32_0 = arith.constant 0 : i32
    %c0_i32_1 = arith.constant 0 : i32
    %c0_i32_2 = arith.constant 0 : i32
    return %c0_i32, %c0_i32_0, %c0_i32_1 : i32, i32, i32
  }
  func.func @transform_5(%arg0: i32) -> (i32, i32, i32) {
    %c0_i32 = arith.constant 0 : i32
    %c0_i32_0 = arith.constant 0 : i32
    %c0_i32_1 = arith.constant 0 : i32
    %c0_i32_2 = arith.constant 0 : i32
    return %c0_i32, %c0_i32_0, %c0_i32_1 : i32, i32, i32
  }
  func.func @transform_6(%arg0: i32) -> (i32, i32, i32) {
    %c0_i32 = arith.constant 0 : i32
    %c0_i32_0 = arith.constant 0 : i32
    %c0_i32_1 = arith.constant 0 : i32
    %c0_i32_2 = arith.constant 0 : i32
    return %c0_i32, %c0_i32_0, %c0_i32_1 : i32, i32, i32
  }
  func.func @transform_7(%arg0: i32) -> (i32, i32, i32) {
    %c0_i32 = arith.constant 0 : i32
    %c0_i32_0 = arith.constant 0 : i32
    %c0_i32_1 = arith.constant 0 : i32
    %c0_i32_2 = arith.constant 0 : i32
    return %c0_i32, %c0_i32_0, %c0_i32_1 : i32, i32, i32
  }
  func.func @transform_8(%arg0: i32) -> (i32, i32, i32) {
    %c0_i32 = arith.constant 0 : i32
    %c0_i32_0 = arith.constant 0 : i32
    %c0_i32_1 = arith.constant 0 : i32
    %c0_i32_2 = arith.constant 0 : i32
    return %c0_i32, %c0_i32_0, %c0_i32_1 : i32, i32, i32
  }
  func.func @transform_9(%arg0: i32) -> (i32, i32, i32) {
    %c0_i32 = arith.constant 0 : i32
    %c0_i32_0 = arith.constant 0 : i32
    %c0_i32_1 = arith.constant 0 : i32
    %c0_i32_2 = arith.constant 0 : i32
    return %c0_i32, %c0_i32_0, %c0_i32_1 : i32, i32, i32
  }
  func.func @transform_10(%arg0: i32) -> (i32, i32, i32) {
    %c0_i32 = arith.constant 0 : i32
    %c0_i32_0 = arith.constant 0 : i32
    %c0_i32_1 = arith.constant 0 : i32
    %c0_i32_2 = arith.constant 0 : i32
    return %c0_i32, %c0_i32_0, %c0_i32_1 : i32, i32, i32
  }
  func.func @transform_11(%arg0: i32) -> (i32, i32, i32) {
    %c0_i32 = arith.constant 0 : i32
    %c0_i32_0 = arith.constant 0 : i32
    %c0_i32_1 = arith.constant 0 : i32
    %c0_i32_2 = arith.constant 0 : i32
    return %c0_i32, %c0_i32_0, %c0_i32_1 : i32, i32, i32
  }
  func.func @transform_12(%arg0: i32) -> (i32, i32, i32) {
    %c0_i32 = arith.constant 0 : i32
    %c0_i32_0 = arith.constant 0 : i32
    %c0_i32_1 = arith.constant 0 : i32
    return %arg0, %c0_i32, %c0_i32_0 : i32, i32, i32
  }
}

</mosaic_0001>

<llo_original>
// kernel: tpu_custom_call.1
$region0: #{tpu_custom_call.1}
  #allocation0 [shape = 'u32[]', space=smem, size = 0x4, offset = 0x4, fixed_abs, tag = 'smem constant byte address 0x4 - core index']
  #allocation1 [shape = 'u32[72,128]{1,0:T(1,128)}', space=vmem, size = 0x9000, scoped, tag = 'internal scratch']
  %s0 = inlined_call_operand.hbm [shape: f32[2,8,32], index: 0, kind: input, shape index: {}]
  %s1 = inlined_call_operand.hbm [shape: f32[2,1,8], index: 1, kind: input, shape index: {}]
  %s2 = inlined_call_operand.hbm [shape: f32[5,1,32], index: 2, kind: input, shape index: {}]
  %s3 = inlined_call_operand.hbm [shape: f32[5,1,32], index: 3, kind: input, shape index: {}]
  %s4 = inlined_call_operand.vmem [shape: f32[2,32,96], index: 4, kind: input, shape index: {}]
  %s5 = inlined_call_operand.vmem [shape: f32[2,1,96], index: 5, kind: input, shape index: {}]
  %s6 = inlined_call_operand.vmem [shape: f32[2,32,32], index: 6, kind: input, shape index: {}]
  %s7 = inlined_call_operand.vmem [shape: f32[2,1,32], index: 7, kind: input, shape index: {}]
  %s8 = inlined_call_operand.vmem [shape: f32[2,32,64], index: 8, kind: input, shape index: {}]
  %s9 = inlined_call_operand.vmem [shape: f32[2,1,64], index: 9, kind: input, shape index: {}]
  %s10 = inlined_call_operand.vmem [shape: f32[2,64,32], index: 10, kind: input, shape index: {}]
  %s11 = inlined_call_operand.vmem [shape: f32[2,1,32], index: 11, kind: input, shape index: {}]
  %s12 = inlined_call_operand.hbm [shape: f32[2,8,32], index: 12, kind: output, shape index: {}]
  %s13 = sld [smem:[#allocation0]]
  $region97: #{tpu_custom_call.1} parent=0
    _
  %s15 = ssub.s32 1, %s13
  %s16 = scalar_select 0, %s15, %s13
  $region1: #{tpu_custom_call.1} parent=0
    #allocation2 [shape = 'u8[8192]{0}', space=vmem, size = 0x2000, scoped, tag = 'input window, operand 0']
    #allocation3 [shape = 's32[2]{0}', space=sflag, size = 0x8, scoped, tag = 'scoped memory for tpu_custom_call.1']
    #allocation4 [shape = 's32[2]{0}', space=sflag, size = 0x8, scoped, tag = 'scoped memory for tpu_custom_call.1']
    #allocation5 [shape = 'u8[1024]{0}', space=vmem, size = 0x400, scoped, tag = 'input window, operand 1']
    #allocation6 [shape = 's32[2]{0}', space=sflag, size = 0x8, scoped, tag = 'scoped memory for tpu_custom_call.1']
    #allocation7 [shape = 'u8[2560]{0}', space=vmem, size = 0xc00, scoped, tag = 'input window, operand 2, single buffered']
    #allocation8 [shape = 'u8[2560]{0}', space=vmem, size = 0xc00, scoped, tag = 'input window, operand 3, single buffered']
    #allocation9 [shape = 's32[1]{0}', space=sflag, size = 0x4, scoped, tag = 'scoped memory for tpu_custom_call.1']
    #allocation10 [shape = 'u8[8192]{0}', space=vmem, size = 0x2000, scoped, tag = 'output window, operand 0']
    %17 = vsyncpa [#allocation3], 0
    %s18 = scalar_lea.sflag [#allocation3], 1
    %19 = vsyncpa %s18, 0
    %20 = vsyncpa [#allocation6], 0
    %s21 = scalar_lea.sflag [#allocation6], 1
    %22 = vsyncpa %s21, 0
    %23 = vsyncpa [#allocation9], 0
    %24 = vsyncpa [#allocation4], 0
    %s25 = scalar_lea.sflag [#allocation4], 1
    %26 = vsyncpa %s25, 0
    loop: start=0, step=1, limit=4
    $region2: #{tpu_custom_call.1} parent=1 // loop_pre_header
      _
    $region3: #{tpu_custom_call.1} parent=1 // loop_header
      %s28 = sphi 0, %s32
      %p29 = scmp.ge.s32.totalorder %s28, 4
      %s38 = sphi 0, %s40
      %s41 = sphi 0, %s38
      %s42 = sphi 0, %s41
      %s58 = sphi 0, %s42
      %s64 = sphi 0, %s66
      %s67 = sphi 0, %s64
      %s68 = sphi 0, %s67
      %s84 = sphi 0, %s68
      %s88 = sphi 0, %s88
      %s90 = sphi 0, %s88
      %s91 = sphi 0, %s90
      %s105 = sphi 0, %s91
      %s109 = sphi 0, %s109
      %s111 = sphi 0, %s109
      %s112 = sphi 0, %s111
      %s126 = sphi 0, %s112
      %s130 = sphi 0, %s130
      %s132 = sphi 0, %s130
      %s133 = sphi 0, %s132
      %s147 = sphi 0, %s133
      %s151 = sphi 0, %s151
      %s153 = sphi 0, %s151
      %s154 = sphi 0, %s153
      %s168 = sphi 0, %s154
      %s172 = sphi 0, %s172
      %s174 = sphi 0, %s172
      %s175 = sphi 0, %s174
      %s189 = sphi 0, %s175
      %s193 = sphi 0, %s193
      %s195 = sphi 0, %s193
      %s196 = sphi 0, %s195
      %s210 = sphi 0, %s196
      %s214 = sphi 0, %s214
      %s216 = sphi 0, %s214
      %s217 = sphi 0, %s216
      %s231 = sphi 0, %s217
      %s235 = sphi 0, %s235
      %s237 = sphi 0, %s235
      %s238 = sphi 0, %s237
      %s252 = sphi 0, %s238
      %s256 = sphi 0, %s256
      %s258 = sphi 0, %s256
      %s259 = sphi 0, %s258
      %s273 = sphi 0, %s259
      %s277 = sphi 0, %s277
      %s279 = sphi 0, %s277
      %s280 = sphi 0, %s279
      %s294 = sphi 0, %s280
      %s300 = sphi 0, %s302
      %s303 = sphi 0, %s300
      %s304 = sphi 0, %s303
      %s320 = sphi 0, %s304
    $region4: #{tpu_custom_call.1} parent=1 // loop_header_branch
      %31 = sbr.rel (%p29) target = $region8
    $region5: #{tpu_custom_call.1} parent=1 // loop_body
      %s33 = ssub.s32 %s28, 1
      %s34 = ssub.s32 %s28, 2
      %s35 = sadd.s32 %s28, 1
      %s36 = ssub.s32 %s28, %s35
      %p37 = scmp.eq.s32.totalorder %s36, 0
      %s39 = sadd.s32 %s38, 1
      %s40 = scalar_select %p37, %s38, %s39
      %p43 = pneg %p37
      %p44 = scmp.eq.s32.totalorder %s28, 1
      %p45 = por %p43, %p44
      %p46 = scmp.ne.s32.totalorder %s38, %s41
      %p47 = scmp.eq.s32.totalorder %s28, 0
      %p48 = por %p46, %p47
      %p49 = scmp.ne.s32.totalorder %s38, %s41
      %p50 = scmp.eq.s32.totalorder %s33, 1
      %p51 = por %p49, %p50
      %p52 = scmp.ne.s32.totalorder %s41, %s42
      %p53 = scmp.eq.s32.totalorder %s33, 0
      %p54 = por %p52, %p53
      %p55 = scmp.ne.s32.totalorder %s41, %s42
      %p56 = scmp.eq.s32.totalorder %s34, 1
      %p57 = por %p55, %p56
      %p59 = scmp.ne.s32.totalorder %s42, %s58
      %p60 = scmp.eq.s32.totalorder %s34, 0
      %p61 = por %p59, %p60
      %s62 = ssub.s32 %s28, %s35
      %p63 = scmp.eq.s32.totalorder %s62, 0
      %s65 = sadd.s32 %s64, 1
      %s66 = scalar_select %p63, %s64, %s65
      %p69 = pneg %p63
      %p70 = scmp.eq.s32.totalorder %s28, 1
      %p71 = por %p69, %p70
      %p72 = scmp.ne.s32.totalorder %s64, %s67
      %p73 = scmp.eq.s32.totalorder %s28, 0
      %p74 = por %p72, %p73
      %p75 = scmp.ne.s32.totalorder %s64, %s67
      %p76 = scmp.eq.s32.totalorder %s33, 1
      %p77 = por %p75, %p76
      %p78 = scmp.ne.s32.totalorder %s67, %s68
      %p79 = scmp.eq.s32.totalorder %s33, 0
      %p80 = por %p78, %p79
      %p81 = scmp.ne.s32.totalorder %s67, %s68
      %p82 = scmp.eq.s32.totalorder %s34, 1
      %p83 = por %p81, %p82
      %p85 = scmp.ne.s32.totalorder %s68, %s84
      %p86 = scmp.eq.s32.totalorder %s34, 0
      %p87 = por %p85, %p86
      %s89 = sadd.s32 %s88, 1
      %p92 = scmp.eq.s32.totalorder %s28, 1
      %p93 = scmp.ne.s32.totalorder %s88, %s90
      %p94 = scmp.eq.s32.totalorder %s28, 0
      %p95 = por %p93, %p94
      %p96 = scmp.ne.s32.totalorder %s88, %s90
      %p97 = scmp.eq.s32.totalorder %s33, 1
      %p98 = por %p96, %p97
      %p99 = scmp.ne.s32.totalorder %s90, %s91
      %p100 = scmp.eq.s32.totalorder %s33, 0
      %p101 = por %p99, %p100
      %p102 = scmp.ne.s32.totalorder %s90, %s91
      %p103 = scmp.eq.s32.totalorder %s34, 1
      %p104 = por %p102, %p103
      %p106 = scmp.ne.s32.totalorder %s91, %s105
      %p107 = scmp.eq.s32.totalorder %s34, 0
      %p108 = por %p106, %p107
      %s110 = sadd.s32 %s109, 1
      %p113 = scmp.eq.s32.totalorder %s28, 1
      %p114 = scmp.ne.s32.totalorder %s109, %s111
      %p115 = scmp.eq.s32.totalorder %s28, 0
      %p116 = por %p114, %p115
      %p117 = scmp.ne.s32.totalorder %s109, %s111
      %p118 = scmp.eq.s32.totalorder %s33, 1
      %p119 = por %p117, %p118
      %p120 = scmp.ne.s32.totalorder %s111, %s112
      %p121 = scmp.eq.s32.totalorder %s33, 0
      %p122 = por %p120, %p121
      %p123 = scmp.ne.s32.totalorder %s111, %s112
      %p124 = scmp.eq.s32.totalorder %s34, 1
      %p125 = por %p123, %p124
      %p127 = scmp.ne.s32.totalorder %s112, %s126
      %p128 = scmp.eq.s32.totalorder %s34, 0
      %p129 = por %p127, %p128
      %s131 = sadd.s32 %s130, 1
      %p134 = scmp.eq.s32.totalorder %s28, 1
      %p135 = scmp.ne.s32.totalorder %s130, %s132
      %p136 = scmp.eq.s32.totalorder %s28, 0
      %p137 = por %p135, %p136
      %p138 = scmp.ne.s32.totalorder %s130, %s132
      %p139 = scmp.eq.s32.totalorder %s33, 1
      %p140 = por %p138, %p139
      %p141 = scmp.ne.s32.totalorder %s132, %s133
      %p142 = scmp.eq.s32.totalorder %s33, 0
      %p143 = por %p141, %p142
      %p144 = scmp.ne.s32.totalorder %s132, %s133
      %p145 = scmp.eq.s32.totalorder %s34, 1
      %p146 = por %p144, %p145
      %p148 = scmp.ne.s32.totalorder %s133, %s147
      %p149 = scmp.eq.s32.totalorder %s34, 0
      %p150 = por %p148, %p149
      %s152 = sadd.s32 %s151, 1
      %p155 = scmp.eq.s32.totalorder %s28, 1
      %p156 = scmp.ne.s32.totalorder %s151, %s153
      %p157 = scmp.eq.s32.totalorder %s28, 0
      %p158 = por %p156, %p157
      %p159 = scmp.ne.s32.totalorder %s151, %s153
      %p160 = scmp.eq.s32.totalorder %s33, 1
      %p161 = por %p159, %p160
      %p162 = scmp.ne.s32.totalorder %s153, %s154
      %p163 = scmp.eq.s32.totalorder %s33, 0
      %p164 = por %p162, %p163
      %p165 = scmp.ne.s32.totalorder %s153, %s154
      %p166 = scmp.eq.s32.totalorder %s34, 1
      %p167 = por %p165, %p166
      %p169 = scmp.ne.s32.totalorder %s154, %s168
      %p170 = scmp.eq.s32.totalorder %s34, 0
      %p171 = por %p169, %p170
      %s173 = sadd.s32 %s172, 1
      %p176 = scmp.eq.s32.totalorder %s28, 1
      %p177 = scmp.ne.s32.totalorder %s172, %s174
      %p178 = scmp.eq.s32.totalorder %s28, 0
      %p179 = por %p177, %p178
      %p180 = scmp.ne.s32.totalorder %s172, %s174
      %p181 = scmp.eq.s32.totalorder %s33, 1
      %p182 = por %p180, %p181
      %p183 = scmp.ne.s32.totalorder %s174, %s175
      %p184 = scmp.eq.s32.totalorder %s33, 0
      %p185 = por %p183, %p184
      %p186 = scmp.ne.s32.totalorder %s174, %s175
      %p187 = scmp.eq.s32.totalorder %s34, 1
      %p188 = por %p186, %p187
      %p190 = scmp.ne.s32.totalorder %s175, %s189
      %p191 = scmp.eq.s32.totalorder %s34, 0
      %p192 = por %p190, %p191
      %s194 = sadd.s32 %s193, 1
      %p197 = scmp.eq.s32.totalorder %s28, 1
      %p198 = scmp.ne.s32.totalorder %s193, %s195
      %p199 = scmp.eq.s32.totalorder %s28, 0
      %p200 = por %p198, %p199
      %p201 = scmp.ne.s32.totalorder %s193, %s195
      %p202 = scmp.eq.s32.totalorder %s33, 1
      %p203 = por %p201, %p202
      %p204 = scmp.ne.s32.totalorder %s195, %s196
      %p205 = scmp.eq.s32.totalorder %s33, 0
      %p206 = por %p204, %p205
      %p207 = scmp.ne.s32.totalorder %s195, %s196
      %p208 = scmp.eq.s32.totalorder %s34, 1
      %p209 = por %p207, %p208
      %p211 = scmp.ne.s32.totalorder %s196, %s210
      %p212 = scmp.eq.s32.totalorder %s34, 0
      %p213 = por %p211, %p212
      %s215 = sadd.s32 %s214, 1
      %p218 = scmp.eq.s32.totalorder %s28, 1
      %p219 = scmp.ne.s32.totalorder %s214, %s216
      %p220 = scmp.eq.s32.totalorder %s28, 0
      %p221 = por %p219, %p220
      %p222 = scmp.ne.s32.totalorder %s214, %s216
      %p223 = scmp.eq.s32.totalorder %s33, 1
      %p224 = por %p222, %p223
      %p225 = scmp.ne.s32.totalorder %s216, %s217
      %p226 = scmp.eq.s32.totalorder %s33, 0
      %p227 = por %p225, %p226
      %p228 = scmp.ne.s32.totalorder %s216, %s217
      %p229 = scmp.eq.s32.totalorder %s34, 1
      %p230 = por %p228, %p229
      %p232 = scmp.ne.s32.totalorder %s217, %s231
      %p233 = scmp.eq.s32.totalorder %s34, 0
      %p234 = por %p232, %p233
      %s236 = sadd.s32 %s235, 1
      %p239 = scmp.eq.s32.totalorder %s28, 1
      %p240 = scmp.ne.s32.totalorder %s235, %s237
      %p241 = scmp.eq.s32.totalorder %s28, 0
      %p242 = por %p240, %p241
      %p243 = scmp.ne.s32.totalorder %s235, %s237
      %p244 = scmp.eq.s32.totalorder %s33, 1
      %p245 = por %p243, %p244
      %p246 = scmp.ne.s32.totalorder %s237, %s238
      %p247 = scmp.eq.s32.totalorder %s33, 0
      %p248 = por %p246, %p247
      %p249 = scmp.ne.s32.totalorder %s237, %s238
      %p250 = scmp.eq.s32.totalorder %s34, 1
      %p251 = por %p249, %p250
      %p253 = scmp.ne.s32.totalorder %s238, %s252
      %p254 = scmp.eq.s32.totalorder %s34, 0
      %p255 = por %p253, %p254
      %s257 = sadd.s32 %s256, 1
      %p260 = scmp.eq.s32.totalorder %s28, 1
      %p261 = scmp.ne.s32.totalorder %s256, %s258
      %p262 = scmp.eq.s32.totalorder %s28, 0
      %p263 = por %p261, %p262
      %p264 = scmp.ne.s32.totalorder %s256, %s258
      %p265 = scmp.eq.s32.totalorder %s33, 1
      %p266 = por %p264, %p265
      %p267 = scmp.ne.s32.totalorder %s258, %s259
      %p268 = scmp.eq.s32.totalorder %s33, 0
      %p269 = por %p267, %p268
      %p270 = scmp.ne.s32.totalorder %s258, %s259
      %p271 = scmp.eq.s32.totalorder %s34, 1
      %p272 = por %p270, %p271
      %p274 = scmp.ne.s32.totalorder %s259, %s273
      %p275 = scmp.eq.s32.totalorder %s34, 0
      %p276 = por %p274, %p275
      %s278 = sadd.s32 %s277, 1
      %p281 = scmp.eq.s32.totalorder %s28, 1
      %p282 = scmp.ne.s32.totalorder %s277, %s279
      %p283 = scmp.eq.s32.totalorder %s28, 0
      %p284 = por %p282, %p283
      %p285 = scmp.ne.s32.totalorder %s277, %s279
      %p286 = scmp.eq.s32.totalorder %s33, 1
      %p287 = por %p285, %p286
      %p288 = scmp.ne.s32.totalorder %s279, %s280
      %p289 = scmp.eq.s32.totalorder %s33, 0
      %p290 = por %p288, %p289
      %p291 = scmp.ne.s32.totalorder %s279, %s280
      %p292 = scmp.eq.s32.totalorder %s34, 1
      %p293 = por %p291, %p292
      %p295 = scmp.ne.s32.totalorder %s280, %s294
      %p296 = scmp.eq.s32.totalorder %s34, 0
      %p297 = por %p295, %p296
      %s298 = ssub.s32 %s28, %s35
      %p299 = scmp.eq.s32.totalorder %s298, 0
      %s301 = sadd.s32 %s300, 1
      %s302 = scalar_select %p299, %s300, %s301
      %p305 = pneg %p299
      %p306 = scmp.eq.s32.totalorder %s28, 1
      %p307 = por %p305, %p306
      %p308 = scmp.ne.s32.totalorder %s300, %s303
      %p309 = scmp.eq.s32.totalorder %s28, 0
      %p310 = por %p308, %p309
      %p311 = scmp.ne.s32.totalorder %s300, %s303
      %p312 = scmp.eq.s32.totalorder %s33, 1
      %p313 = por %p311, %p312
      %p314 = scmp.ne.s32.totalorder %s303, %s304
      %p315 = scmp.eq.s32.totalorder %s33, 0
      %p316 = por %p314, %p315
      %p317 = scmp.ne.s32.totalorder %s303, %s304
      %p318 = scmp.eq.s32.totalorder %s34, 1
      %p319 = por %p317, %p318
      %p321 = scmp.ne.s32.totalorder %s304, %s320
      %p322 = scmp.eq.s32.totalorder %s34, 0
      %p323 = por %p321, %p322
      %p324 = scmp.le.s32.totalorder 1, %s28
      %p325 = scmp.lt.s32.totalorder %s28, 3
      %p326 = pnand %p324, %p325
      %p327 = pneg %p326
      // Predicated region
      $region9: #{tpu_custom_call.1} parent=5 // pred_check
        _
      $region10: #{tpu_custom_call.1} parent=5 // pred_check_branch
        %329 = sbr.rel (%p326) target = $region12
      $region11: #{tpu_custom_call.1} parent=5 // pred_region
        %s330 = ssub.s32 %s28, 1
        // Predicated region
        $region13: #{tpu_custom_call.1} parent=11 // pred_check
          %p331 = pneg %p101
        $region14: #{tpu_custom_call.1} parent=11 // pred_check_branch
          %333 = sbr.rel (%p331) target = $region16
        $region15: #{tpu_custom_call.1} parent=11 // pred_region
          %335 = vsyncadd [#allocation6], 0
          %s336 = sshll.u32 %s2, 4
          %s337 = int_to_ptr.hbm [resolvable:$true] %s336
          %s338 = sshll.u32 [#allocation7], 4
          %s339 = int_to_ptr.vmem [resolvable:$true] %s338
          %344 = dma.hbm_to_vmem [thread:$0]  %s337, 80, %s339, [#allocation6], 16, 16, 1
        $region16: #{tpu_custom_call.1} parent=11 // pred_fallthru
          _
        // Predicated region
        $region17: #{tpu_custom_call.1} parent=11 // pred_check
          %p345 = pneg %p122
        $region18: #{tpu_custom_call.1} parent=11 // pred_check_branch
          %347 = sbr.rel (%p345) target = $region20
        $region19: #{tpu_custom_call.1} parent=11 // pred_region
          %349 = vsyncadd [#allocation9], 0
          %s350 = sshll.u32 %s3, 4
          %s351 = int_to_ptr.hbm [resolvable:$true] %s350
          %s352 = sshll.u32 [#allocation8], 4
          %s353 = int_to_ptr.vmem [resolvable:$true] %s352
          %358 = dma.hbm_to_vmem [thread:$0]  %s351, 80, %s353, [#allocation9], 16, 16, 1
        $region20: #{tpu_custom_call.1} parent=11 // pred_fallthru
          _
        // Predicated region
        $region21: #{tpu_custom_call.1} parent=11 // pred_check
          %p359 = pneg %p143
        $region22: #{tpu_custom_call.1} parent=11 // pred_check_branch
          %361 = sbr.rel (%p359) target = $region24
        $region23: #{tpu_custom_call.1} parent=11 // pred_region
          _
        $region24: #{tpu_custom_call.1} parent=11 // pred_fallthru
          _
        // Predicated region
        $region25: #{tpu_custom_call.1} parent=11 // pred_check
          %p362 = pneg %p164
        $region26: #{tpu_custom_call.1} parent=11 // pred_check_branch
          %364 = sbr.rel (%p362) target = $region28
        $region27: #{tpu_custom_call.1} parent=11 // pred_region
          _
        $region28: #{tpu_custom_call.1} parent=11 // pred_fallthru
          _
        // Predicated region
        $region29: #{tpu_custom_call.1} parent=11 // pred_check
          %p365 = pneg %p185
        $region30: #{tpu_custom_call.1} parent=11 // pred_check_branch
          %367 = sbr.rel (%p365) target = $region32
        $region31: #{tpu_custom_call.1} parent=11 // pred_region
          _
        $region32: #{tpu_custom_call.1} parent=11 // pred_fallthru
          _
        // Predicated region
        $region33: #{tpu_custom_call.1} parent=11 // pred_check
          %p368 = pneg %p206
        $region34: #{tpu_custom_call.1} parent=11 // pred_check_branch
          %370 = sbr.rel (%p368) target = $region36
        $region35: #{tpu_custom_call.1} parent=11 // pred_region
          _
        $region36: #{tpu_custom_call.1} parent=11 // pred_fallthru
          _
        // Predicated region
        $region37: #{tpu_custom_call.1} parent=11 // pred_check
          %p371 = pneg %p227
        $region38: #{tpu_custom_call.1} parent=11 // pred_check_branch
          %373 = sbr.rel (%p371) target = $region40
        $region39: #{tpu_custom_call.1} parent=11 // pred_region
          _
        $region40: #{tpu_custom_call.1} parent=11 // pred_fallthru
          _
        // Predicated region
        $region41: #{tpu_custom_call.1} parent=11 // pred_check
          %p374 = pneg %p248
        $region42: #{tpu_custom_call.1} parent=11 // pred_check_branch
          %376 = sbr.rel (%p374) target = $region44
        $region43: #{tpu_custom_call.1} parent=11 // pred_region
          _
        $region44: #{tpu_custom_call.1} parent=11 // pred_fallthru
          _
        // Predicated region
        $region45: #{tpu_custom_call.1} parent=11 // pred_check
          %p377 = pneg %p269
        $region46: #{tpu_custom_call.1} parent=11 // pred_check_branch
          %379 = sbr.rel (%p377) target = $region48
        $region47: #{tpu_custom_call.1} parent=11 // pred_region
          _
        $region48: #{tpu_custom_call.1} parent=11 // pred_fallthru
          _
        // Predicated region
        $region49: #{tpu_custom_call.1} parent=11 // pred_check
          %p380 = pneg %p290
        $region50: #{tpu_custom_call.1} parent=11 // pred_check_branch
          %382 = sbr.rel (%p380) target = $region52
        $region51: #{tpu_custom_call.1} parent=11 // pred_region
          _
        $region52: #{tpu_custom_call.1} parent=11 // pred_fallthru
          _
      $region12: #{tpu_custom_call.1} parent=5 // pred_fallthru
        _
      %p383 = scmp.lt.s32.totalorder %s28, 2
      // Predicated region
      $region53: #{tpu_custom_call.1} parent=5 // pred_check
        %p384 = pneg %p383
      $region54: #{tpu_custom_call.1} parent=5 // pred_check_branch
        %386 = sbr.rel (%p384) target = $region56
      $region55: #{tpu_custom_call.1} parent=5 // pred_region
        // Predicated region
        $region57: #{tpu_custom_call.1} parent=55 // pred_check
          %p387 = pneg %p48
        $region58: #{tpu_custom_call.1} parent=55 // pred_check_branch
          %389 = sbr.rel (%p387) target = $region60
        $region59: #{tpu_custom_call.1} parent=55 // pred_region
          %s390 = sand.u32 %s38, 1
          %s391 = scalar_lea.sflag [#allocation3], %s390
          %s392 = sand.u32 %s38, 1
          %s393 = smul.addr %s392, 8
          %s394 = scalar_lea.vmem [#allocation2], %s393
          %396 = vsyncadd %s391, 0
          %s397 = smul.addr %s28, 8
          %s398 = scalar_lea.hbm %s0, %s397
          %s400 = sshll.u32 %s398, 4
          %s401 = int_to_ptr.hbm [resolvable:$true] %s400
          %s402 = sshll.u32 %s394, 4
          %s403 = int_to_ptr.vmem [resolvable:$true] %s402
          %405 = dma.hbm_to_vmem [thread:$0]  %s401, 128, %s403, %s391
        $region60: #{tpu_custom_call.1} parent=55 // pred_fallthru
          _
        // Predicated region
        $region61: #{tpu_custom_call.1} parent=55 // pred_check
          %p406 = pneg %p74
        $region62: #{tpu_custom_call.1} parent=55 // pred_check_branch
          %408 = sbr.rel (%p406) target = $region64
        $region63: #{tpu_custom_call.1} parent=55 // pred_region
          %s409 = sand.u32 %s28, 1
          %s410 = scalar_lea.sflag [#allocation6], %s409
          %s411 = sand.u32 %s64, 1
          %s412 = scalar_lea.vmem [#allocation5], %s411
          %414 = vsyncadd %s410, 0
          %s415 = scalar_lea.hbm %s1, %s28
          %s417 = sshll.u32 %s415, 4
          %s418 = int_to_ptr.hbm [resolvable:$true] %s417
          %s419 = sshll.u32 %s412, 4
          %s420 = int_to_ptr.vmem [resolvable:$true] %s419
          %422 = dma.hbm_to_vmem [thread:$0]  %s418, 16, %s420, %s410
        $region64: #{tpu_custom_call.1} parent=55 // pred_fallthru
          _
      $region56: #{tpu_custom_call.1} parent=5 // pred_fallthru
        _
      %p423 = scmp.le.s32.totalorder 1, %s28
      %p424 = scmp.lt.s32.totalorder %s28, 3
      %p425 = pnand %p423, %p424
      %p426 = pneg %p425
      // Predicated region
      $region65: #{tpu_custom_call.1} parent=5 // pred_check
        _
      $region66: #{tpu_custom_call.1} parent=5 // pred_check_branch
        %428 = sbr.rel (%p425) target = $region68
      $region67: #{tpu_custom_call.1} parent=5 // pred_region
        %s429 = ssub.s32 %s28, 1
        %s430 = sand.u32 %s41, 1
        %s431 = scalar_lea.sflag [#allocation3], %s430
        %s432 = sand.u32 %s41, 1
        %s433 = smul.addr %s432, 8
        %s434 = scalar_lea.vmem [#allocation2], %s433
        // Predicated region
        $region69: #{tpu_custom_call.1} parent=67 // pred_check
          %p435 = pneg %p54
        $region70: #{tpu_custom_call.1} parent=67 // pred_check_branch
          %437 = sbr.rel (%p435) target = $region72
        $region71: #{tpu_custom_call.1} parent=67 // pred_region
          %439 = dma.done %s431, 128
        $region72: #{tpu_custom_call.1} parent=67 // pred_fallthru
          _
        %s440 = sand.u32 %s33, 1
        %s441 = scalar_lea.sflag [#allocation6], %s440
        %s442 = sand.u32 %s67, 1
        %s443 = scalar_lea.vmem [#allocation5], %s442
        // Predicated region
        $region73: #{tpu_custom_call.1} parent=67 // pred_check
          %p444 = pneg %p80
        $region74: #{tpu_custom_call.1} parent=67 // pred_check_branch
          %446 = sbr.rel (%p444) target = $region76
        $region75: #{tpu_custom_call.1} parent=67 // pred_region
          %448 = dma.done %s441, 16
        $region76: #{tpu_custom_call.1} parent=67 // pred_fallthru
          _
        // Predicated region
        $region77: #{tpu_custom_call.1} parent=67 // pred_check
          %p449 = pneg %p101
        $region78: #{tpu_custom_call.1} parent=67 // pred_check_branch
          %451 = sbr.rel (%p449) target = $region80
        $region79: #{tpu_custom_call.1} parent=67 // pred_region
          %453 = dma.done [#allocation6], 80
        $region80: #{tpu_custom_call.1} parent=67 // pred_fallthru
          _
        // Predicated region
        $region81: #{tpu_custom_call.1} parent=67 // pred_check
          %p454 = pneg %p122
        $region82: #{tpu_custom_call.1} parent=67 // pred_check_branch
          %456 = sbr.rel (%p454) target = $region84
        $region83: #{tpu_custom_call.1} parent=67 // pred_region
          %458 = dma.done [#allocation9], 80
        $region84: #{tpu_custom_call.1} parent=67 // pred_fallthru
          _
        %s459 = sand.u32 %s41, 1
        %s460 = scalar_lea.sflag [#allocation3], %s459
        %s461 = sand.u32 %s41, 1
        %s462 = smul.addr %s461, 8
        %s463 = scalar_lea.vmem [#allocation2], %s462
        %p464 = pneg %p54
        %p465 = pneg %p51
        %s466 = sand.u32 %s33, 1
        %s467 = scalar_lea.sflag [#allocation6], %s466
        %s468 = sand.u32 %s67, 1
        %s469 = scalar_lea.vmem [#allocation5], %s468
        %p470 = pneg %p80
        %p471 = pneg %p77
        %p472 = pneg %p101
        %p473 = pneg %p98
        %p474 = pneg %p122
        %p475 = pneg %p119
        %p476 = pneg %p143
        %p477 = pneg %p140
        %p478 = pneg %p164
        %p479 = pneg %p161
        %p480 = pneg %p185
        %p481 = pneg %p182
        %p482 = pneg %p206
        %p483 = pneg %p203
        %p484 = pneg %p227
        %p485 = pneg %p224
        %p486 = pneg %p248
        %p487 = pneg %p245
        %p488 = pneg %p269
        %p489 = pneg %p266
        %p490 = pneg %p290
        %p491 = pneg %p287
        %p492 = pneg %p316
        %p493 = pneg %p313
        %s494 = sand.u32 %s303, 1
        %s495 = scalar_lea.sflag [#allocation4], %s494
        %s496 = sand.u32 %s303, 1
        %s497 = smul.addr %s496, 8
        %s498 = scalar_lea.vmem [#allocation10], %s497
        %v499 = vld [vmem:[%s434] sm:$0xff]
        %v500 = vld [vmem:[%s443] sm:$0x1]
        %v501 = vld [vmem:[#allocation7] sm:$0x1]
        %v502 = vld [vmem:[#allocation8] sm:$0x1]
        %vm503 = vcmask 261120
        %v504 = vsel %vm503, %v499, 0.0
        %505 = vadd.xlane.f32.xlu0 %v504
        %v506 = vpop.xlane.xlu0 %505
        %v507 = vrcp.pop 32.0
        %v508 = vmul.f32 32.0, %v507
        %v509 = vsub.f32 1.0, %v508
        %v510 = vmul.f32 %v507, %v509
        %v511 = vadd.f32 %v507, %v510
        %vm512 = vweird.f32 %v507
        %v513 = vsel %vm512, %v507, %v511
        %v514 = vmul.f32 %v506, %v513
        %v515 = vsub.f32 %v499, %v514
        %v516 = vmul.f32 %v515, %v515
        %v517 = vsel %vm503, %v516, 0.0
        %518 = vadd.xlane.f32.xlu0 %v517
        %v519 = vpop.xlane.xlu0 %518
        %v520 = vrcp.pop 31.0
        %v521 = vmul.f32 31.0, %v520
        %v522 = vsub.f32 1.0, %v521
        %v523 = vmul.f32 %v520, %v522
        %v524 = vadd.f32 %v520, %v523
        %vm525 = vweird.f32 %v520
        %v526 = vsel %vm525, %v520, %v524
        %v527 = vmul.f32 %v519, %v526
        %v528 = vrsqrt.pop %v527
        %v529 = vmul.f32 %v528, %v527
        %v530 = vmul.f32 %v529, %v528
        %v531 = vmul.f32 0.5, %v530
        %v532 = vsub.f32 1.5, %v531
        %v533 = vmul.f32 %v528, %v532
        %v534 = vmul.f32 %v527, %v533
        %vm535 = vcmp.eq.f32.partialorder %v527, inf
        %v536 = vsel %vm535, %v527, %v534
        %vm537 = vcmp.eq.f32.partialorder %v527, 0.0
        %v538 = vand.u32 %v527, 2147483648
        %v539 = vsel %vm537, %v538, %v536
        %v540 = vadd.f32 %v539, 1e-06
        %v541 = vrcp.pop %v540
        %v543 = vperm.slane %v501, 0
        %v545 = vmul.f32 %v543, %v515
        %v546 = vmul.f32 %v545, %v541
        %v548 = vperm.slane %v502, 0
        %v550 = vadd.f32 %v546, %v548
        %v551 = vld [vmem:[%s4] sm:$0xff]
        %v552 = vld [vmem:[%s4 + $0x8] sm:$0xff]
        %v553 = vld [vmem:[%s4 + $0x10] sm:$0xff]
        %v554 = vld [vmem:[%s4 + $0x18] sm:$0xff]
        %v555 = vld [vmem:[%s5] sm:$0x1]
        %v557 = vperm.slane %v555, 0
        %v560 = vsel %vm503, %v550, 0
        %562 = vmatpush.msra.mxu0 0.0
        %563 = vmatpush.msra.mxu0 0.0
        %564 = vmatpush.msra.mxu0 0.0
        %565 = vmatpush.msra.mxu0 0.0
        %566 = vmatpush.msra.mxu0 0.0
        %567 = vmatpush.msra.mxu0 0.0
        %568 = vmatpush.msra.mxu0 0.0
        %569 = vmatpush.msra.mxu0 0.0
        %570 = vmatpush.msra.mxu0 0.0
        %571 = vmatpush.msra.mxu0 0.0
        %572 = vmatpush.msra.mxu0 0.0
        %573 = vmatpush.msra.mxu0 0.0
        %574 = vmatpush.msra.mxu0 %v554
        %575 = vmatpush.msra.mxu0 %v553
        %576 = vmatpush.msra.mxu0 %v552
        %577 = vmatpush.msra.mxu0 %v551
        %578 = vmatmul.f32.gmra.mxu0 %v560
        %v579 = vpop.f32.mrf.mxu0
        %v580 = vadd.f32 %v557, %v579
        %581 = vdwg.mxu0
        %v582 = vmul.f32 %v580, 0.35355338
        %584 = vrot.lane.b32.xlu0 %v582, 120
        %v585 = vpop.permute.xlu0 %584
        %586 = vrot.lane.b32.xlu0 %v582, 112
        %v587 = vpop.permute.xlu0 %586
        %588 = vrot.lane.b32.xlu0 %v582, 104
        %v589 = vpop.permute.xlu0 %588
        %591 = vrot.lane.b32.xlu0 %v580, 120
        %v592 = vpop.permute.xlu0 %591
        %593 = vrot.lane.b32.xlu0 %v580, 112
        %v594 = vpop.permute.xlu0 %593
        %595 = vrot.lane.b32.xlu0 %v580, 104
        %v596 = vpop.permute.xlu0 %595
        %v598 = vperm.slane %v500, 0
        %600 = vrot.lane.b32.xlu0 %v580, 96
        %v601 = vpop.permute.xlu0 %600
        %vm602 = vcmask 64512
        %v603 = vsel %vm602, %v582, 0
        %v605 = vsel %vm602, %v601, 0
        %607 = vmatpush.xpose.msra.mxu0 0.0
        %608 = vmatpush.xpose.msra.mxu0 0.0
        %609 = vmatpush.xpose.msra.mxu0 0.0
        %610 = vmatpush.xpose.msra.mxu0 0.0
        %611 = vmatpush.xpose.msra.mxu0 0.0
        %612 = vmatpush.xpose.msra.mxu0 0.0
        %613 = vmatpush.xpose.msra.mxu0 0.0
        %614 = vmatpush.xpose.msra.mxu0 0.0
        %615 = vmatpush.xpose.msra.mxu0 0.0
        %616 = vmatpush.xpose.msra.mxu0 0.0
        %617 = vmatpush.xpose.msra.mxu0 0.0
        %618 = vmatpush.xpose.msra.mxu0 0.0
        %619 = vmatpush.xpose.msra.mxu0 0.0
        %620 = vmatpush.xpose.msra.mxu0 0.0
        %621 = vmatpush.xpose.msra.mxu0 0.0
        %622 = vmatpush.xpose.msra.mxu0 %v605
        %623 = vmatmul.f32.gmra.mxu0 %v603
        %v624 = vpop.f32.mrf.mxu0
        %v625 = vadd.f32 %v598, %v624
        %626 = vdwg.mxu0
        %627 = vrot.lane.b32.xlu0 %v592, 96
        %v628 = vpop.permute.xlu0 %627
        %v629 = vsel %vm602, %v585, 0
        %v631 = vsel %vm602, %v628, 0
        %633 = vmatpush.xpose.msra.mxu0 0.0
        %634 = vmatpush.xpose.msra.mxu0 0.0
        %635 = vmatpush.xpose.msra.mxu0 0.0
        %636 = vmatpush.xpose.msra.mxu0 0.0
        %637 = vmatpush.xpose.msra.mxu0 0.0
        %638 = vmatpush.xpose.msra.mxu0 0.0
        %639 = vmatpush.xpose.msra.mxu0 0.0
        %640 = vmatpush.xpose.msra.mxu0 0.0
        %641 = vmatpush.xpose.msra.mxu0 0.0
        %642 = vmatpush.xpose.msra.mxu0 0.0
        %643 = vmatpush.xpose.msra.mxu0 0.0
        %644 = vmatpush.xpose.msra.mxu0 0.0
        %645 = vmatpush.xpose.msra.mxu0 0.0
        %646 = vmatpush.xpose.msra.mxu0 0.0
        %647 = vmatpush.xpose.msra.mxu0 0.0
        %648 = vmatpush.xpose.msra.mxu0 %v631
        %649 = vmatmul.f32.gmra.mxu0 %v629
        %v650 = vpop.f32.mrf.mxu0
        %v651 = vadd.f32 %v598, %v650
        %652 = vdwg.mxu0
        %653 = vrot.lane.b32.xlu0 %v594, 96
        %v654 = vpop.permute.xlu0 %653
        %v655 = vsel %vm602, %v587, 0
        %v657 = vsel %vm602, %v654, 0
        %659 = vmatpush.xpose.msra.mxu0 0.0
        %660 = vmatpush.xpose.msra.mxu0 0.0
        %661 = vmatpush.xpose.msra.mxu0 0.0
        %662 = vmatpush.xpose.msra.mxu0 0.0
        %663 = vmatpush.xpose.msra.mxu0 0.0
        %664 = vmatpush.xpose.msra.mxu0 0.0
        %665 = vmatpush.xpose.msra.mxu0 0.0
        %666 = vmatpush.xpose.msra.mxu0 0.0
        %667 = vmatpush.xpose.msra.mxu0 0.0
        %668 = vmatpush.xpose.msra.mxu0 0.0
        %669 = vmatpush.xpose.msra.mxu0 0.0
        %670 = vmatpush.xpose.msra.mxu0 0.0
        %671 = vmatpush.xpose.msra.mxu0 0.0
        %672 = vmatpush.xpose.msra.mxu0 0.0
        %673 = vmatpush.xpose.msra.mxu0 0.0
        %674 = vmatpush.xpose.msra.mxu0 %v657
        %675 = vmatmul.f32.gmra.mxu0 %v655
        %v676 = vpop.f32.mrf.mxu0
        %v677 = vadd.f32 %v598, %v676
        %678 = vdwg.mxu0
        %679 = vrot.lane.b32.xlu0 %v596, 96
        %v680 = vpop.permute.xlu0 %679
        %v681 = vsel %vm602, %v589, 0
        %v683 = vsel %vm602, %v680, 0
        %685 = vmatpush.xpose.msra.mxu0 0.0
        %686 = vmatpush.xpose.msra.mxu0 0.0
        %687 = vmatpush.xpose.msra.mxu0 0.0
        %688 = vmatpush.xpose.msra.mxu0 0.0
        %689 = vmatpush.xpose.msra.mxu0 0.0
        %690 = vmatpush.xpose.msra.mxu0 0.0
        %691 = vmatpush.xpose.msra.mxu0 0.0
        %692 = vmatpush.xpose.msra.mxu0 0.0
        %693 = vmatpush.xpose.msra.mxu0 0.0
        %694 = vmatpush.xpose.msra.mxu0 0.0
        %695 = vmatpush.xpose.msra.mxu0 0.0
        %696 = vmatpush.xpose.msra.mxu0 0.0
        %697 = vmatpush.xpose.msra.mxu0 0.0
        %698 = vmatpush.xpose.msra.mxu0 0.0
        %699 = vmatpush.xpose.msra.mxu0 0.0
        %700 = vmatpush.xpose.msra.mxu0 %v683
        %701 = vmatmul.f32.gmra.mxu0 %v681
        %v702 = vpop.f32.mrf.mxu0
        %v703 = vadd.f32 %v598, %v702
        %704 = vdwg.mxu0
        %v705 = vsel %vm602, %v625, -inf
        %706 = vmax.xlane.f32.xlu0 %v705
        %v707 = vpop.xlane.xlu0 %706
        %v708 = vsel %vm602, %v651, -inf
        %709 = vmax.xlane.f32.xlu0 %v708
        %v710 = vpop.xlane.xlu0 %709
        %v711 = vsel %vm602, %v677, -inf
        %712 = vmax.xlane.f32.xlu0 %v711
        %v713 = vpop.xlane.xlu0 %712
        %v714 = vsel %vm602, %v703, -inf
        %715 = vmax.xlane.f32.xlu0 %v714
        %v716 = vpop.xlane.xlu0 %715
        %v717 = vsub.f32 %v625, %v707
        %v718 = vsub.f32 %v651, %v710
        %v719 = vsub.f32 %v677, %v713
        %v720 = vsub.f32 %v703, %v716
        %v721 = vmul.f32 %v717, 1.442695
        %v722 = vpow.pop %v721
        %v723 = vmul.f32 %v718, 1.442695
        %v724 = vpow.pop %v723
        %v725 = vmul.f32 %v719, 1.442695
        %v726 = vpow.pop %v725
        %v727 = vmul.f32 %v720, 1.442695
        %v728 = vpow.pop %v727
        %v729 = vsel %vm602, %v722, 0.0
        %730 = vadd.xlane.f32.xlu0 %v729
        %v731 = vpop.xlane.xlu0 %730
        %v732 = vsel %vm602, %v724, 0.0
        %733 = vadd.xlane.f32.xlu0 %v732
        %v734 = vpop.xlane.xlu0 %733
        %v735 = vsel %vm602, %v726, 0.0
        %736 = vadd.xlane.f32.xlu0 %v735
        %v737 = vpop.xlane.xlu0 %736
        %v738 = vsel %vm602, %v728, 0.0
        %739 = vadd.xlane.f32.xlu0 %v738
        %v740 = vpop.xlane.xlu0 %739
        %v741 = vrcp.pop %v731
        %v742 = vrcp.pop %v734
        %v743 = vrcp.pop %v737
        %v744 = vrcp.pop %v740
        %v745 = vmul.f32 %v722, %v741
        %v746 = vmul.f32 %v724, %v742
        %v747 = vmul.f32 %v726, %v743
        %v748 = vmul.f32 %v728, %v744
        %749 = vrot.lane.b32.xlu0 %v580, 64
        %v750 = vpop.permute.xlu0 %749
        %v753 = vsel %vm602, %v745, 0
        %755 = vmatpush.msra.mxu0 0.0
        %756 = vmatpush.msra.mxu0 0.0
        %757 = vmatpush.msra.mxu0 0.0
        %758 = vmatpush.msra.mxu0 0.0
        %759 = vmatpush.msra.mxu0 0.0
        %760 = vmatpush.msra.mxu0 0.0
        %761 = vmatpush.msra.mxu0 0.0
        %762 = vmatpush.msra.mxu0 0.0
        %763 = vmatpush.msra.mxu0 0.0
        %764 = vmatpush.msra.mxu0 0.0
        %765 = vmatpush.msra.mxu0 0.0
        %766 = vmatpush.msra.mxu0 0.0
        %767 = vmatpush.msra.mxu0 0.0
        %768 = vmatpush.msra.mxu0 0.0
        %769 = vmatpush.msra.mxu0 0.0
        %770 = vmatpush.msra.mxu0 %v750
        %771 = vmatmul.f32.gmra.mxu0 %v753
        %v772 = vpop.f32.mrf.mxu0
        %v773 = vadd.f32 0.0, %v772
        %774 = vdwg.mxu0
        %775 = vrot.lane.b32.xlu0 %v592, 64
        %v776 = vpop.permute.xlu0 %775
        %v779 = vsel %vm602, %v746, 0
        %781 = vmatpush.msra.mxu0 0.0
        %782 = vmatpush.msra.mxu0 0.0
        %783 = vmatpush.msra.mxu0 0.0
        %784 = vmatpush.msra.mxu0 0.0
        %785 = vmatpush.msra.mxu0 0.0
        %786 = vmatpush.msra.mxu0 0.0
        %787 = vmatpush.msra.mxu0 0.0
        %788 = vmatpush.msra.mxu0 0.0
        %789 = vmatpush.msra.mxu0 0.0
        %790 = vmatpush.msra.mxu0 0.0
        %791 = vmatpush.msra.mxu0 0.0
        %792 = vmatpush.msra.mxu0 0.0
        %793 = vmatpush.msra.mxu0 0.0
        %794 = vmatpush.msra.mxu0 0.0
        %795 = vmatpush.msra.mxu0 0.0
        %796 = vmatpush.msra.mxu0 %v776
        %797 = vmatmul.f32.gmra.mxu0 %v779
        %v798 = vpop.f32.mrf.mxu0
        %v799 = vadd.f32 0.0, %v798
        %800 = vdwg.mxu0
        %801 = vrot.lane.b32.xlu0 %v594, 64
        %v802 = vpop.permute.xlu0 %801
        %v805 = vsel %vm602, %v747, 0
        %807 = vmatpush.msra.mxu0 0.0
        %808 = vmatpush.msra.mxu0 0.0
        %809 = vmatpush.msra.mxu0 0.0
        %810 = vmatpush.msra.mxu0 0.0
        %811 = vmatpush.msra.mxu0 0.0
        %812 = vmatpush.msra.mxu0 0.0
        %813 = vmatpush.msra.mxu0 0.0
        %814 = vmatpush.msra.mxu0 0.0
        %815 = vmatpush.msra.mxu0 0.0
        %816 = vmatpush.msra.mxu0 0.0
        %817 = vmatpush.msra.mxu0 0.0
        %818 = vmatpush.msra.mxu0 0.0
        %819 = vmatpush.msra.mxu0 0.0
        %820 = vmatpush.msra.mxu0 0.0
        %821 = vmatpush.msra.mxu0 0.0
        %822 = vmatpush.msra.mxu0 %v802
        %823 = vmatmul.f32.gmra.mxu0 %v805
        %v824 = vpop.f32.mrf.mxu0
        %v825 = vadd.f32 0.0, %v824
        %826 = vdwg.mxu0
        %827 = vrot.lane.b32.xlu0 %v596, 64
        %v828 = vpop.permute.xlu0 %827
        %v831 = vsel %vm602, %v748, 0
        %833 = vmatpush.msra.mxu0 0.0
        %834 = vmatpush.msra.mxu0 0.0
        %835 = vmatpush.msra.mxu0 0.0
        %836 = vmatpush.msra.mxu0 0.0
        %837 = vmatpush.msra.mxu0 0.0
        %838 = vmatpush.msra.mxu0 0.0
        %839 = vmatpush.msra.mxu0 0.0
        %840 = vmatpush.msra.mxu0 0.0
        %841 = vmatpush.msra.mxu0 0.0
        %842 = vmatpush.msra.mxu0 0.0
        %843 = vmatpush.msra.mxu0 0.0
        %844 = vmatpush.msra.mxu0 0.0
        %845 = vmatpush.msra.mxu0 0.0
        %846 = vmatpush.msra.mxu0 0.0
        %847 = vmatpush.msra.mxu0 0.0
        %848 = vmatpush.msra.mxu0 %v828
        %849 = vmatmul.f32.gmra.mxu0 %v831
        %v850 = vpop.f32.mrf.mxu0
        %v851 = vadd.f32 0.0, %v850
        %852 = vdwg.mxu0
        %854 = vrot.lane.b32.xlu0 %v799, 8
        %v855 = vpop.permute.xlu0 %854
        %858 = vrot.lane.b32.xlu0 %v825, 16
        %v859 = vpop.permute.xlu0 %858
        %862 = vrot.lane.b32.xlu0 %v851, 24
        %v863 = vpop.permute.xlu0 %862
        %v865 = vsel %vm602, %v773, %v855
        %vm866 = vcmask 130048
        %v867 = vsel %vm866, %v865, %v859
        %vm868 = vcmask 195584
        %v869 = vsel %vm868, %v867, %v863
        %v870 = vld [vmem:[%s6] sm:$0xff]
        %v871 = vld [vmem:[%s6 + $0x8] sm:$0xff]
        %v872 = vld [vmem:[%s6 + $0x10] sm:$0xff]
        %v873 = vld [vmem:[%s6 + $0x18] sm:$0xff]
        %v874 = vld [vmem:[%s7] sm:$0x1]
        %v876 = vperm.slane %v874, 0
        %v879 = vsel %vm503, %v869, 0
        %881 = vmatpush.msra.mxu0 0.0
        %882 = vmatpush.msra.mxu0 0.0
        %883 = vmatpush.msra.mxu0 0.0
        %884 = vmatpush.msra.mxu0 0.0
        %885 = vmatpush.msra.mxu0 0.0
        %886 = vmatpush.msra.mxu0 0.0
        %887 = vmatpush.msra.mxu0 0.0
        %888 = vmatpush.msra.mxu0 0.0
        %889 = vmatpush.msra.mxu0 0.0
        %890 = vmatpush.msra.mxu0 0.0
        %891 = vmatpush.msra.mxu0 0.0
        %892 = vmatpush.msra.mxu0 0.0
        %893 = vmatpush.msra.mxu0 %v873
        %894 = vmatpush.msra.mxu0 %v872
        %895 = vmatpush.msra.mxu0 %v871
        %896 = vmatpush.msra.mxu0 %v870
        %897 = vmatmul.f32.gmra.mxu0 %v879
        %v898 = vpop.f32.mrf.mxu0
        %v899 = vadd.f32 %v876, %v898
        %900 = vdwg.mxu0
        %v901 = vadd.f32 %v499, %v899
        %s902 = scalar_lea.vmem [#allocation7], 1
        %v903 = vld [vmem:[%s902] sm:$0x1]
        %s904 = scalar_lea.vmem [#allocation8], 1
        %v905 = vld [vmem:[%s904] sm:$0x1]
        %v906 = vsel %vm503, %v901, 0.0
        %907 = vadd.xlane.f32.xlu0 %v906
        %v908 = vpop.xlane.xlu0 %907
        %v909 = vmul.f32 %v908, %v513
        %v910 = vsub.f32 %v901, %v909
        %v911 = vmul.f32 %v910, %v910
        %v912 = vsel %vm503, %v911, 0.0
        %913 = vadd.xlane.f32.xlu0 %v912
        %v914 = vpop.xlane.xlu0 %913
        %v915 = vmul.f32 %v914, %v526
        %v916 = vrsqrt.pop %v915
        %v917 = vmul.f32 %v916, %v915
        %v918 = vmul.f32 %v917, %v916
        %v919 = vmul.f32 0.5, %v918
        %v920 = vsub.f32 1.5, %v919
        %v921 = vmul.f32 %v916, %v920
        %v922 = vmul.f32 %v915, %v921
        %vm923 = vcmp.eq.f32.partialorder %v915, inf
        %v924 = vsel %vm923, %v915, %v922
        %vm925 = vcmp.eq.f32.partialorder %v915, 0.0
        %v926 = vand.u32 %v915, 2147483648
        %v927 = vsel %vm925, %v926, %v924
        %v928 = vadd.f32 %v927, 1e-06
        %v929 = vrcp.pop %v928
        %v931 = vperm.slane %v903, 0
        %v933 = vmul.f32 %v931, %v910
        %v934 = vmul.f32 %v933, %v929
        %v936 = vperm.slane %v905, 0
        %v938 = vadd.f32 %v934, %v936
        %v939 = vld [vmem:[%s8] sm:$0xff]
        %v940 = vld [vmem:[%s8 + $0x8] sm:$0xff]
        %v941 = vld [vmem:[%s8 + $0x10] sm:$0xff]
        %v942 = vld [vmem:[%s8 + $0x18] sm:$0xff]
        %v943 = vld [vmem:[%s9] sm:$0x1]
        %v945 = vperm.slane %v943, 0
        %v948 = vsel %vm503, %v938, 0
        %950 = vmatpush.msra.mxu0 0.0
        %951 = vmatpush.msra.mxu0 0.0
        %952 = vmatpush.msra.mxu0 0.0
        %953 = vmatpush.msra.mxu0 0.0
        %954 = vmatpush.msra.mxu0 0.0
        %955 = vmatpush.msra.mxu0 0.0
        %956 = vmatpush.msra.mxu0 0.0
        %957 = vmatpush.msra.mxu0 0.0
        %958 = vmatpush.msra.mxu0 0.0
        %959 = vmatpush.msra.mxu0 0.0
        %960 = vmatpush.msra.mxu0 0.0
        %961 = vmatpush.msra.mxu0 0.0
        %962 = vmatpush.msra.mxu0 %v942
        %963 = vmatpush.msra.mxu0 %v941
        %964 = vmatpush.msra.mxu0 %v940
        %965 = vmatpush.msra.mxu0 %v939
        %966 = vmatmul.f32.gmra.mxu0 %v948
        %v967 = vpop.f32.mrf.mxu0
        %v968 = vadd.f32 %v945, %v967
        %969 = vdwg.mxu0
        %v970 = vmax.f32 %v968, 0.0
        %v971 = vld [vmem:[%s10] sm:$0xff]
        %v972 = vld [vmem:[%s10 + $0x8] sm:$0xff]
        %v973 = vld [vmem:[%s10 + $0x10] sm:$0xff]
        %v974 = vld [vmem:[%s10 + $0x18] sm:$0xff]
        %v975 = vld [vmem:[%s10 + $0x20] sm:$0xff]
        %v976 = vld [vmem:[%s10 + $0x28] sm:$0xff]
        %v977 = vld [vmem:[%s10 + $0x30] sm:$0xff]
        %v978 = vld [vmem:[%s10 + $0x38] sm:$0xff]
        %v979 = vld [vmem:[%s11] sm:$0x1]
        %v981 = vperm.slane %v979, 0
        %vm983 = vcmask 523264
        %v985 = vsel %vm983, %v970, 0
        %987 = vmatpush.msra.mxu0 0.0
        %988 = vmatpush.msra.mxu0 0.0
        %989 = vmatpush.msra.mxu0 0.0
        %990 = vmatpush.msra.mxu0 0.0
        %991 = vmatpush.msra.mxu0 0.0
        %992 = vmatpush.msra.mxu0 0.0
        %993 = vmatpush.msra.mxu0 0.0
        %994 = vmatpush.msra.mxu0 0.0
        %995 = vmatpush.msra.mxu0 %v978
        %996 = vmatpush.msra.mxu0 %v977
        %997 = vmatpush.msra.mxu0 %v976
        %998 = vmatpush.msra.mxu0 %v975
        %999 = vmatpush.msra.mxu0 %v974
        %1000 = vmatpush.msra.mxu0 %v973
        %1001 = vmatpush.msra.mxu0 %v972
        %1002 = vmatpush.msra.mxu0 %v971
        %1003 = vmatmul.f32.gmra.mxu0 %v985
        %v1004 = vpop.f32.mrf.mxu0
        %v1005 = vadd.f32 %v981, %v1004
        %1006 = vdwg.mxu0
        %v1007 = vadd.f32 %v901, %v1005
        %s1008 = scalar_lea.vmem [#allocation7], 2
        %v1009 = vld [vmem:[%s1008] sm:$0x1]
        %s1010 = scalar_lea.vmem [#allocation8], 2
        %v1011 = vld [vmem:[%s1010] sm:$0x1]
        %v1012 = vsel %vm503, %v1007, 0.0
        %1013 = vadd.xlane.f32.xlu0 %v1012
        %v1014 = vpop.xlane.xlu0 %1013
        %v1015 = vmul.f32 %v1014, %v513
        %v1016 = vsub.f32 %v1007, %v1015
        %v1017 = vmul.f32 %v1016, %v1016
        %v1018 = vsel %vm503, %v1017, 0.0
        %1019 = vadd.xlane.f32.xlu0 %v1018
        %v1020 = vpop.xlane.xlu0 %1019
        %v1021 = vmul.f32 %v1020, %v526
        %v1022 = vrsqrt.pop %v1021
        %v1023 = vmul.f32 %v1022, %v1021
        %v1024 = vmul.f32 %v1023, %v1022
        %v1025 = vmul.f32 0.5, %v1024
        %v1026 = vsub.f32 1.5, %v1025
        %v1027 = vmul.f32 %v1022, %v1026
        %v1028 = vmul.f32 %v1021, %v1027
        %vm1029 = vcmp.eq.f32.partialorder %v1021, inf
        %v1030 = vsel %vm1029, %v1021, %v1028
        %vm1031 = vcmp.eq.f32.partialorder %v1021, 0.0
        %v1032 = vand.u32 %v1021, 2147483648
        %v1033 = vsel %vm1031, %v1032, %v1030
        %v1034 = vadd.f32 %v1033, 1e-06
        %v1035 = vrcp.pop %v1034
        %v1037 = vperm.slane %v1009, 0
        %v1039 = vmul.f32 %v1037, %v1016
        %v1040 = vmul.f32 %v1039, %v1035
        %v1042 = vperm.slane %v1011, 0
        %v1044 = vadd.f32 %v1040, %v1042
        %s1045 = scalar_lea.vmem %s4, 32
        %v1046 = vld [vmem:[%s1045] sm:$0xff]
        %v1047 = vld [vmem:[%s1045 + $0x8] sm:$0xff]
        %v1048 = vld [vmem:[%s1045 + $0x10] sm:$0xff]
        %v1049 = vld [vmem:[%s1045 + $0x18] sm:$0xff]
        %s1050 = scalar_lea.vmem %s5, 1
        %v1051 = vld [vmem:[%s1050] sm:$0x1]
        %v1053 = vperm.slane %v1051, 0
        %v1056 = vsel %vm503, %v1044, 0
        %1058 = vmatpush.msra.mxu0 0.0
        %1059 = vmatpush.msra.mxu0 0.0
        %1060 = vmatpush.msra.mxu0 0.0
        %1061 = vmatpush.msra.mxu0 0.0
        %1062 = vmatpush.msra.mxu0 0.0
        %1063 = vmatpush.msra.mxu0 0.0
        %1064 = vmatpush.msra.mxu0 0.0
        %1065 = vmatpush.msra.mxu0 0.0
        %1066 = vmatpush.msra.mxu0 0.0
        %1067 = vmatpush.msra.mxu0 0.0
        %1068 = vmatpush.msra.mxu0 0.0
        %1069 = vmatpush.msra.mxu0 0.0
        %1070 = vmatpush.msra.mxu0 %v1049
        %1071 = vmatpush.msra.mxu0 %v1048
        %1072 = vmatpush.msra.mxu0 %v1047
        %1073 = vmatpush.msra.mxu0 %v1046
        %1074 = vmatmul.f32.gmra.mxu0 %v1056
        %v1075 = vpop.f32.mrf.mxu0
        %v1076 = vadd.f32 %v1053, %v1075
        %1077 = vdwg.mxu0
        %v1078 = vmul.f32 %v1076, 0.35355338
        %1080 = vrot.lane.b32.xlu0 %v1078, 120
        %v1081 = vpop.permute.xlu0 %1080
        %1082 = vrot.lane.b32.xlu0 %v1078, 112
        %v1083 = vpop.permute.xlu0 %1082
        %1084 = vrot.lane.b32.xlu0 %v1078, 104
        %v1085 = vpop.permute.xlu0 %1084
        %1087 = vrot.lane.b32.xlu0 %v1076, 120
        %v1088 = vpop.permute.xlu0 %1087
        %1089 = vrot.lane.b32.xlu0 %v1076, 112
        %v1090 = vpop.permute.xlu0 %1089
        %1091 = vrot.lane.b32.xlu0 %v1076, 104
        %v1092 = vpop.permute.xlu0 %1091
        %1093 = vrot.lane.b32.xlu0 %v1076, 96
        %v1094 = vpop.permute.xlu0 %1093
        %v1095 = vsel %vm602, %v1078, 0
        %v1097 = vsel %vm602, %v1094, 0
        %1099 = vmatpush.xpose.msra.mxu0 0.0
        %1100 = vmatpush.xpose.msra.mxu0 0.0
        %1101 = vmatpush.xpose.msra.mxu0 0.0
        %1102 = vmatpush.xpose.msra.mxu0 0.0
        %1103 = vmatpush.xpose.msra.mxu0 0.0
        %1104 = vmatpush.xpose.msra.mxu0 0.0
        %1105 = vmatpush.xpose.msra.mxu0 0.0
        %1106 = vmatpush.xpose.msra.mxu0 0.0
        %1107 = vmatpush.xpose.msra.mxu0 0.0
        %1108 = vmatpush.xpose.msra.mxu0 0.0
        %1109 = vmatpush.xpose.msra.mxu0 0.0
        %1110 = vmatpush.xpose.msra.mxu0 0.0
        %1111 = vmatpush.xpose.msra.mxu0 0.0
        %1112 = vmatpush.xpose.msra.mxu0 0.0
        %1113 = vmatpush.xpose.msra.mxu0 0.0
        %1114 = vmatpush.xpose.msra.mxu0 %v1097
        %1115 = vmatmul.f32.gmra.mxu0 %v1095
        %v1116 = vpop.f32.mrf.mxu0
        %v1117 = vadd.f32 %v598, %v1116
        %1118 = vdwg.mxu0
        %1119 = vrot.lane.b32.xlu0 %v1088, 96
        %v1120 = vpop.permute.xlu0 %1119
        %v1121 = vsel %vm602, %v1081, 0
        %v1123 = vsel %vm602, %v1120, 0
        %1125 = vmatpush.xpose.msra.mxu0 0.0
        %1126 = vmatpush.xpose.msra.mxu0 0.0
        %1127 = vmatpush.xpose.msra.mxu0 0.0
        %1128 = vmatpush.xpose.msra.mxu0 0.0
        %1129 = vmatpush.xpose.msra.mxu0 0.0
        %1130 = vmatpush.xpose.msra.mxu0 0.0
        %1131 = vmatpush.xpose.msra.mxu0 0.0
        %1132 = vmatpush.xpose.msra.mxu0 0.0
        %1133 = vmatpush.xpose.msra.mxu0 0.0
        %1134 = vmatpush.xpose.msra.mxu0 0.0
        %1135 = vmatpush.xpose.msra.mxu0 0.0
        %1136 = vmatpush.xpose.msra.mxu0 0.0
        %1137 = vmatpush.xpose.msra.mxu0 0.0
        %1138 = vmatpush.xpose.msra.mxu0 0.0
        %1139 = vmatpush.xpose.msra.mxu0 0.0
        %1140 = vmatpush.xpose.msra.mxu0 %v1123
        %1141 = vmatmul.f32.gmra.mxu0 %v1121
        %v1142 = vpop.f32.mrf.mxu0
        %v1143 = vadd.f32 %v598, %v1142
        %1144 = vdwg.mxu0
        %1145 = vrot.lane.b32.xlu0 %v1090, 96
        %v1146 = vpop.permute.xlu0 %1145
        %v1147 = vsel %vm602, %v1083, 0
        %v1149 = vsel %vm602, %v1146, 0
        %1151 = vmatpush.xpose.msra.mxu0 0.0
        %1152 = vmatpush.xpose.msra.mxu0 0.0
        %1153 = vmatpush.xpose.msra.mxu0 0.0
        %1154 = vmatpush.xpose.msra.mxu0 0.0
        %1155 = vmatpush.xpose.msra.mxu0 0.0
        %1156 = vmatpush.xpose.msra.mxu0 0.0
        %1157 = vmatpush.xpose.msra.mxu0 0.0
        %1158 = vmatpush.xpose.msra.mxu0 0.0
        %1159 = vmatpush.xpose.msra.mxu0 0.0
        %1160 = vmatpush.xpose.msra.mxu0 0.0
        %1161 = vmatpush.xpose.msra.mxu0 0.0
        %1162 = vmatpush.xpose.msra.mxu0 0.0
        %1163 = vmatpush.xpose.msra.mxu0 0.0
        %1164 = vmatpush.xpose.msra.mxu0 0.0
        %1165 = vmatpush.xpose.msra.mxu0 0.0
        %1166 = vmatpush.xpose.msra.mxu0 %v1149
        %1167 = vmatmul.f32.gmra.mxu0 %v1147
        %v1168 = vpop.f32.mrf.mxu0
        %v1169 = vadd.f32 %v598, %v1168
        %1170 = vdwg.mxu0
        %1171 = vrot.lane.b32.xlu0 %v1092, 96
        %v1172 = vpop.permute.xlu0 %1171
        %v1173 = vsel %vm602, %v1085, 0
        %v1175 = vsel %vm602, %v1172, 0
        %1177 = vmatpush.xpose.msra.mxu0 0.0
        %1178 = vmatpush.xpose.msra.mxu0 0.0
        %1179 = vmatpush.xpose.msra.mxu0 0.0
        %1180 = vmatpush.xpose.msra.mxu0 0.0
        %1181 = vmatpush.xpose.msra.mxu0 0.0
        %1182 = vmatpush.xpose.msra.mxu0 0.0
        %1183 = vmatpush.xpose.msra.mxu0 0.0
        %1184 = vmatpush.xpose.msra.mxu0 0.0
        %1185 = vmatpush.xpose.msra.mxu0 0.0
        %1186 = vmatpush.xpose.msra.mxu0 0.0
        %1187 = vmatpush.xpose.msra.mxu0 0.0
        %1188 = vmatpush.xpose.msra.mxu0 0.0
        %1189 = vmatpush.xpose.msra.mxu0 0.0
        %1190 = vmatpush.xpose.msra.mxu0 0.0
        %1191 = vmatpush.xpose.msra.mxu0 0.0
        %1192 = vmatpush.xpose.msra.mxu0 %v1175
        %1193 = vmatmul.f32.gmra.mxu0 %v1173
        %v1194 = vpop.f32.mrf.mxu0
        %v1195 = vadd.f32 %v598, %v1194
        %1196 = vdwg.mxu0
        %v1197 = vsel %vm602, %v1117, -inf
        %1198 = vmax.xlane.f32.xlu0 %v1197
        %v1199 = vpop.xlane.xlu0 %1198
        %v1200 = vsel %vm602, %v1143, -inf
        %1201 = vmax.xlane.f32.xlu0 %v1200
        %v1202 = vpop.xlane.xlu0 %1201
        %v1203 = vsel %vm602, %v1169, -inf
        %1204 = vmax.xlane.f32.xlu0 %v1203
        %v1205 = vpop.xlane.xlu0 %1204
        %v1206 = vsel %vm602, %v1195, -inf
        %1207 = vmax.xlane.f32.xlu0 %v1206
        %v1208 = vpop.xlane.xlu0 %1207
        %v1209 = vsub.f32 %v1117, %v1199
        %v1210 = vsub.f32 %v1143, %v1202
        %v1211 = vsub.f32 %v1169, %v1205
        %v1212 = vsub.f32 %v1195, %v1208
        %v1213 = vmul.f32 %v1209, 1.442695
        %v1214 = vpow.pop %v1213
        %v1215 = vmul.f32 %v1210, 1.442695
        %v1216 = vpow.pop %v1215
        %v1217 = vmul.f32 %v1211, 1.442695
        %v1218 = vpow.pop %v1217
        %v1219 = vmul.f32 %v1212, 1.442695
        %v1220 = vpow.pop %v1219
        %v1221 = vsel %vm602, %v1214, 0.0
        %1222 = vadd.xlane.f32.xlu0 %v1221
        %v1223 = vpop.xlane.xlu0 %1222
        %v1224 = vsel %vm602, %v1216, 0.0
        %1225 = vadd.xlane.f32.xlu0 %v1224
        %v1226 = vpop.xlane.xlu0 %1225
        %v1227 = vsel %vm602, %v1218, 0.0
        %1228 = vadd.xlane.f32.xlu0 %v1227
        %v1229 = vpop.xlane.xlu0 %1228
        %v1230 = vsel %vm602, %v1220, 0.0
        %1231 = vadd.xlane.f32.xlu0 %v1230
        %v1232 = vpop.xlane.xlu0 %1231
        %v1233 = vrcp.pop %v1223
        %v1234 = vrcp.pop %v1226
        %v1235 = vrcp.pop %v1229
        %v1236 = vrcp.pop %v1232
        %v1237 = vmul.f32 %v1214, %v1233
        %v1238 = vmul.f32 %v1216, %v1234
        %v1239 = vmul.f32 %v1218, %v1235
        %v1240 = vmul.f32 %v1220, %v1236
        %1241 = vrot.lane.b32.xlu0 %v1076, 64
        %v1242 = vpop.permute.xlu0 %1241
        %v1245 = vsel %vm602, %v1237, 0
        %1247 = vmatpush.msra.mxu0 0.0
        %1248 = vmatpush.msra.mxu0 0.0
        %1249 = vmatpush.msra.mxu0 0.0
        %1250 = vmatpush.msra.mxu0 0.0
        %1251 = vmatpush.msra.mxu0 0.0
        %1252 = vmatpush.msra.mxu0 0.0
        %1253 = vmatpush.msra.mxu0 0.0
        %1254 = vmatpush.msra.mxu0 0.0
        %1255 = vmatpush.msra.mxu0 0.0
        %1256 = vmatpush.msra.mxu0 0.0
        %1257 = vmatpush.msra.mxu0 0.0
        %1258 = vmatpush.msra.mxu0 0.0
        %1259 = vmatpush.msra.mxu0 0.0
        %1260 = vmatpush.msra.mxu0 0.0
        %1261 = vmatpush.msra.mxu0 0.0
        %1262 = vmatpush.msra.mxu0 %v1242
        %1263 = vmatmul.f32.gmra.mxu0 %v1245
        %v1264 = vpop.f32.mrf.mxu0
        %v1265 = vadd.f32 0.0, %v1264
        %1266 = vdwg.mxu0
        %1267 = vrot.lane.b32.xlu0 %v1088, 64
        %v1268 = vpop.permute.xlu0 %1267
        %v1271 = vsel %vm602, %v1238, 0
        %1273 = vmatpush.msra.mxu0 0.0
        %1274 = vmatpush.msra.mxu0 0.0
        %1275 = vmatpush.msra.mxu0 0.0
        %1276 = vmatpush.msra.mxu0 0.0
        %1277 = vmatpush.msra.mxu0 0.0
        %1278 = vmatpush.msra.mxu0 0.0
        %1279 = vmatpush.msra.mxu0 0.0
        %1280 = vmatpush.msra.mxu0 0.0
        %1281 = vmatpush.msra.mxu0 0.0
        %1282 = vmatpush.msra.mxu0 0.0
        %1283 = vmatpush.msra.mxu0 0.0
        %1284 = vmatpush.msra.mxu0 0.0
        %1285 = vmatpush.msra.mxu0 0.0
        %1286 = vmatpush.msra.mxu0 0.0
        %1287 = vmatpush.msra.mxu0 0.0
        %1288 = vmatpush.msra.mxu0 %v1268
        %1289 = vmatmul.f32.gmra.mxu0 %v1271
        %v1290 = vpop.f32.mrf.mxu0
        %v1291 = vadd.f32 0.0, %v1290
        %1292 = vdwg.mxu0
        %1293 = vrot.lane.b32.xlu0 %v1090, 64
        %v1294 = vpop.permute.xlu0 %1293
        %v1297 = vsel %vm602, %v1239, 0
        %1299 = vmatpush.msra.mxu0 0.0
        %1300 = vmatpush.msra.mxu0 0.0
        %1301 = vmatpush.msra.mxu0 0.0
        %1302 = vmatpush.msra.mxu0 0.0
        %1303 = vmatpush.msra.mxu0 0.0
        %1304 = vmatpush.msra.mxu0 0.0
        %1305 = vmatpush.msra.mxu0 0.0
        %1306 = vmatpush.msra.mxu0 0.0
        %1307 = vmatpush.msra.mxu0 0.0
        %1308 = vmatpush.msra.mxu0 0.0
        %1309 = vmatpush.msra.mxu0 0.0
        %1310 = vmatpush.msra.mxu0 0.0
        %1311 = vmatpush.msra.mxu0 0.0
        %1312 = vmatpush.msra.mxu0 0.0
        %1313 = vmatpush.msra.mxu0 0.0
        %1314 = vmatpush.msra.mxu0 %v1294
        %1315 = vmatmul.f32.gmra.mxu0 %v1297
        %v1316 = vpop.f32.mrf.mxu0
        %v1317 = vadd.f32 0.0, %v1316
        %1318 = vdwg.mxu0
        %1319 = vrot.lane.b32.xlu0 %v1092, 64
        %v1320 = vpop.permute.xlu0 %1319
        %v1323 = vsel %vm602, %v1240, 0
        %1325 = vmatpush.msra.mxu0 0.0
        %1326 = vmatpush.msra.mxu0 0.0
        %1327 = vmatpush.msra.mxu0 0.0
        %1328 = vmatpush.msra.mxu0 0.0
        %1329 = vmatpush.msra.mxu0 0.0
        %1330 = vmatpush.msra.mxu0 0.0
        %1331 = vmatpush.msra.mxu0 0.0
        %1332 = vmatpush.msra.mxu0 0.0
        %1333 = vmatpush.msra.mxu0 0.0
        %1334 = vmatpush.msra.mxu0 0.0
        %1335 = vmatpush.msra.mxu0 0.0
        %1336 = vmatpush.msra.mxu0 0.0
        %1337 = vmatpush.msra.mxu0 0.0
        %1338 = vmatpush.msra.mxu0 0.0
        %1339 = vmatpush.msra.mxu0 0.0
        %1340 = vmatpush.msra.mxu0 %v1320
        %1341 = vmatmul.f32.gmra.mxu0 %v1323
        %v1342 = vpop.f32.mrf.mxu0
        %v1343 = vadd.f32 0.0, %v1342
        %1344 = vdwg.mxu0
        %1346 = vrot.lane.b32.xlu0 %v1291, 8
        %v1347 = vpop.permute.xlu0 %1346
        %1350 = vrot.lane.b32.xlu0 %v1317, 16
        %v1351 = vpop.permute.xlu0 %1350
        %1354 = vrot.lane.b32.xlu0 %v1343, 24
        %v1355 = vpop.permute.xlu0 %1354
        %v1357 = vsel %vm602, %v1265, %v1347
        %v1358 = vsel %vm866, %v1357, %v1351
        %v1359 = vsel %vm868, %v1358, %v1355
        %s1360 = scalar_lea.vmem %s6, 32
        %v1361 = vld [vmem:[%s1360] sm:$0xff]
        %v1362 = vld [vmem:[%s1360 + $0x8] sm:$0xff]
        %v1363 = vld [vmem:[%s1360 + $0x10] sm:$0xff]
        %v1364 = vld [vmem:[%s1360 + $0x18] sm:$0xff]
        %s1365 = scalar_lea.vmem %s7, 1
        %v1366 = vld [vmem:[%s1365] sm:$0x1]
        %v1368 = vperm.slane %v1366, 0
        %v1371 = vsel %vm503, %v1359, 0
        %1373 = vmatpush.msra.mxu0 0.0
        %1374 = vmatpush.msra.mxu0 0.0
        %1375 = vmatpush.msra.mxu0 0.0
        %1376 = vmatpush.msra.mxu0 0.0
        %1377 = vmatpush.msra.mxu0 0.0
        %1378 = vmatpush.msra.mxu0 0.0
        %1379 = vmatpush.msra.mxu0 0.0
        %1380 = vmatpush.msra.mxu0 0.0
        %1381 = vmatpush.msra.mxu0 0.0
        %1382 = vmatpush.msra.mxu0 0.0
        %1383 = vmatpush.msra.mxu0 0.0
        %1384 = vmatpush.msra.mxu0 0.0
        %1385 = vmatpush.msra.mxu0 %v1364
        %1386 = vmatpush.msra.mxu0 %v1363
        %1387 = vmatpush.msra.mxu0 %v1362
        %1388 = vmatpush.msra.mxu0 %v1361
        %1389 = vmatmul.f32.gmra.mxu0 %v1371
        %v1390 = vpop.f32.mrf.mxu0
        %v1391 = vadd.f32 %v1368, %v1390
        %1392 = vdwg.mxu0
        %v1393 = vadd.f32 %v1007, %v1391
        %s1394 = scalar_lea.vmem [#allocation7], 3
        %v1395 = vld [vmem:[%s1394] sm:$0x1]
        %s1396 = scalar_lea.vmem [#allocation8], 3
        %v1397 = vld [vmem:[%s1396] sm:$0x1]
        %v1398 = vsel %vm503, %v1393, 0.0
        %1399 = vadd.xlane.f32.xlu0 %v1398
        %v1400 = vpop.xlane.xlu0 %1399
        %v1401 = vmul.f32 %v1400, %v513
        %v1402 = vsub.f32 %v1393, %v1401
        %v1403 = vmul.f32 %v1402, %v1402
        %v1404 = vsel %vm503, %v1403, 0.0
        %1405 = vadd.xlane.f32.xlu0 %v1404
        %v1406 = vpop.xlane.xlu0 %1405
        %v1407 = vmul.f32 %v1406, %v526
        %v1408 = vrsqrt.pop %v1407
        %v1409 = vmul.f32 %v1408, %v1407
        %v1410 = vmul.f32 %v1409, %v1408
        %v1411 = vmul.f32 0.5, %v1410
        %v1412 = vsub.f32 1.5, %v1411
        %v1413 = vmul.f32 %v1408, %v1412
        %v1414 = vmul.f32 %v1407, %v1413
        %vm1415 = vcmp.eq.f32.partialorder %v1407, inf
        %v1416 = vsel %vm1415, %v1407, %v1414
        %vm1417 = vcmp.eq.f32.partialorder %v1407, 0.0
        %v1418 = vand.u32 %v1407, 2147483648
        %v1419 = vsel %vm1417, %v1418, %v1416
        %v1420 = vadd.f32 %v1419, 1e-06
        %v1421 = vrcp.pop %v1420
        %v1423 = vperm.slane %v1395, 0
        %v1425 = vmul.f32 %v1423, %v1402
        %v1426 = vmul.f32 %v1425, %v1421
        %v1428 = vperm.slane %v1397, 0
        %v1430 = vadd.f32 %v1426, %v1428
        %s1431 = scalar_lea.vmem %s8, 32
        %v1432 = vld [vmem:[%s1431] sm:$0xff]
        %v1433 = vld [vmem:[%s1431 + $0x8] sm:$0xff]
        %v1434 = vld [vmem:[%s1431 + $0x10] sm:$0xff]
        %v1435 = vld [vmem:[%s1431 + $0x18] sm:$0xff]
        %s1436 = scalar_lea.vmem %s9, 1
        %v1437 = vld [vmem:[%s1436] sm:$0x1]
        %v1439 = vperm.slane %v1437, 0
        %v1442 = vsel %vm503, %v1430, 0
        %1444 = vmatpush.msra.mxu0 0.0
        %1445 = vmatpush.msra.mxu0 0.0
        %1446 = vmatpush.msra.mxu0 0.0
        %1447 = vmatpush.msra.mxu0 0.0
        %1448 = vmatpush.msra.mxu0 0.0
        %1449 = vmatpush.msra.mxu0 0.0
        %1450 = vmatpush.msra.mxu0 0.0
        %1451 = vmatpush.msra.mxu0 0.0
        %1452 = vmatpush.msra.mxu0 0.0
        %1453 = vmatpush.msra.mxu0 0.0
        %1454 = vmatpush.msra.mxu0 0.0
        %1455 = vmatpush.msra.mxu0 0.0
        %1456 = vmatpush.msra.mxu0 %v1435
        %1457 = vmatpush.msra.mxu0 %v1434
        %1458 = vmatpush.msra.mxu0 %v1433
        %1459 = vmatpush.msra.mxu0 %v1432
        %1460 = vmatmul.f32.gmra.mxu0 %v1442
        %v1461 = vpop.f32.mrf.mxu0
        %v1462 = vadd.f32 %v1439, %v1461
        %1463 = vdwg.mxu0
        %v1464 = vmax.f32 %v1462, 0.0
        %s1465 = scalar_lea.vmem %s10, 64
        %v1466 = vld [vmem:[%s1465] sm:$0xff]
        %v1467 = vld [vmem:[%s1465 + $0x8] sm:$0xff]
        %v1468 = vld [vmem:[%s1465 + $0x10] sm:$0xff]
        %v1469 = vld [vmem:[%s1465 + $0x18] sm:$0xff]
        %v1470 = vld [vmem:[%s1465 + $0x20] sm:$0xff]
        %v1471 = vld [vmem:[%s1465 + $0x28] sm:$0xff]
        %v1472 = vld [vmem:[%s1465 + $0x30] sm:$0xff]
        %v1473 = vld [vmem:[%s1465 + $0x38] sm:$0xff]
        %s1474 = scalar_lea.vmem %s11, 1
        %v1475 = vld [vmem:[%s1474] sm:$0x1]
        %v1477 = vperm.slane %v1475, 0
        %v1480 = vsel %vm983, %v1464, 0
        %1482 = vmatpush.msra.mxu0 0.0
        %1483 = vmatpush.msra.mxu0 0.0
        %1484 = vmatpush.msra.mxu0 0.0
        %1485 = vmatpush.msra.mxu0 0.0
        %1486 = vmatpush.msra.mxu0 0.0
        %1487 = vmatpush.msra.mxu0 0.0
        %1488 = vmatpush.msra.mxu0 0.0
        %1489 = vmatpush.msra.mxu0 0.0
        %1490 = vmatpush.msra.mxu0 %v1473
        %1491 = vmatpush.msra.mxu0 %v1472
        %1492 = vmatpush.msra.mxu0 %v1471
        %1493 = vmatpush.msra.mxu0 %v1470
        %1494 = vmatpush.msra.mxu0 %v1469
        %1495 = vmatpush.msra.mxu0 %v1468
        %1496 = vmatpush.msra.mxu0 %v1467
        %1497 = vmatpush.msra.mxu0 %v1466
        %1498 = vmatmul.f32.gmra.mxu0 %v1480
        %v1499 = vpop.f32.mrf.mxu0
        %v1500 = vadd.f32 %v1477, %v1499
        %1501 = vdwg.mxu0
        %v1502 = vadd.f32 %v1393, %v1500
        %s1503 = scalar_lea.vmem [#allocation7], 4
        %v1504 = vld [vmem:[%s1503] sm:$0x1]
        %s1505 = scalar_lea.vmem [#allocation8], 4
        %v1506 = vld [vmem:[%s1505] sm:$0x1]
        %v1507 = vsel %vm503, %v1502, 0.0
        %1508 = vadd.xlane.f32.xlu0 %v1507
        %v1509 = vpop.xlane.xlu0 %1508
        %v1510 = vmul.f32 %v1509, %v513
        %v1511 = vsub.f32 %v1502, %v1510
        %v1512 = vmul.f32 %v1511, %v1511
        %v1513 = vsel %vm503, %v1512, 0.0
        %1514 = vadd.xlane.f32.xlu0 %v1513
        %v1515 = vpop.xlane.xlu0 %1514
        %v1516 = vmul.f32 %v1515, %v526
        %v1517 = vrsqrt.pop %v1516
        %v1518 = vmul.f32 %v1517, %v1516
        %v1519 = vmul.f32 %v1518, %v1517
        %v1520 = vmul.f32 0.5, %v1519
        %v1521 = vsub.f32 1.5, %v1520
        %v1522 = vmul.f32 %v1517, %v1521
        %v1523 = vmul.f32 %v1516, %v1522
        %vm1524 = vcmp.eq.f32.partialorder %v1516, inf
        %v1525 = vsel %vm1524, %v1516, %v1523
        %vm1526 = vcmp.eq.f32.partialorder %v1516, 0.0
        %v1527 = vand.u32 %v1516, 2147483648
        %v1528 = vsel %vm1526, %v1527, %v1525
        %v1529 = vadd.f32 %v1528, 1e-06
        %v1530 = vrcp.pop %v1529
        %v1532 = vperm.slane %v1504, 0
        %v1534 = vmul.f32 %v1532, %v1511
        %v1535 = vmul.f32 %v1534, %v1530
        %v1537 = vperm.slane %v1506, 0
        %v1539 = vadd.f32 %v1535, %v1537
        %1540 = vst.msk [vmem:[%s498] sm:$0xff] %vm503, %v1539
        %s1541 = sand.u32 %s303, 1
        %s1542 = scalar_lea.sflag [#allocation4], %s1541
        %s1543 = sand.u32 %s303, 1
        %s1544 = smul.addr %s1543, 8
        %s1545 = scalar_lea.vmem [#allocation10], %s1544
        // Predicated region
        $region85: #{tpu_custom_call.1} parent=67 // pred_check
          %p1546 = pneg %p313
        $region86: #{tpu_custom_call.1} parent=67 // pred_check_branch
          %1548 = sbr.rel (%p1546) target = $region88
        $region87: #{tpu_custom_call.1} parent=67 // pred_region
          %1550 = vsyncadd %s1542, 0
          %s1551 = smul.addr %s33, 8
          %s1552 = scalar_lea.hbm %s12, %s1551
          %s1554 = sshll.u32 %s1545, 4
          %s1555 = int_to_ptr.vmem [resolvable:$true] %s1554
          %s1556 = sshll.u32 %s1552, 4
          %s1557 = int_to_ptr.hbm [resolvable:$true] %s1556
          %1559 = dma.vmem_to_hbm [thread:$0]  %s1555, 128, %s1557, %s1542
        $region88: #{tpu_custom_call.1} parent=67 // pred_fallthru
          _
      $region68: #{tpu_custom_call.1} parent=5 // pred_fallthru
        _
      %p1560 = scmp.le.s32.totalorder 2, %s28
      // Predicated region
      $region89: #{tpu_custom_call.1} parent=5 // pred_check
        %p1561 = pneg %p1560
      $region90: #{tpu_custom_call.1} parent=5 // pred_check_branch
        %1563 = sbr.rel (%p1561) target = $region92
      $region91: #{tpu_custom_call.1} parent=5 // pred_region
        %s1564 = ssub.s32 %s28, 2
        // Predicated region
        $region93: #{tpu_custom_call.1} parent=91 // pred_check
          %p1565 = pneg %p319
        $region94: #{tpu_custom_call.1} parent=91 // pred_check_branch
          %1567 = sbr.rel (%p1565) target = $region96
        $region95: #{tpu_custom_call.1} parent=91 // pred_region
          %s1568 = sand.u32 %s304, 1
          %s1569 = scalar_lea.sflag [#allocation4], %s1568
          %s1570 = sand.u32 %s304, 1
          %s1571 = smul.addr %s1570, 8
          %s1572 = scalar_lea.vmem [#allocation10], %s1571
          %1574 = dma.done %s1569, 128
        $region96: #{tpu_custom_call.1} parent=91 // pred_fallthru
          _
      $region92: #{tpu_custom_call.1} parent=5 // pred_fallthru
        _
    $region6: #{tpu_custom_call.1} parent=1 // loop_footer
      %s32 = sadd.s32 1, %s28
    $region7: #{tpu_custom_call.1} parent=1 // loop_footer_branch
      %27 = sbr.rel target = $region3
    $region8: #{tpu_custom_call.1} parent=1 // loop_exit
      _
    %1575 = vsyncpa [#allocation3], 1
    %s1576 = scalar_lea.sflag [#allocation3], 1
    %1577 = vsyncpa %s1576, 1
    %1578 = vsyncpa [#allocation6], 1
    %s1579 = scalar_lea.sflag [#allocation6], 1
    %1580 = vsyncpa %s1579, 1
    %1581 = vsyncpa [#allocation9], 1
    %1582 = vsyncpa [#allocation4], 1
    %s1583 = scalar_lea.sflag [#allocation4], 1
    %1584 = vsyncpa %s1583, 1

</llo_original>
